<compile_context>
chip_gen: v5e
topology: v5e:2x2
jax: 0.10.0
libtpu: 0.0.40
codegen_flags: <defaults>
</compile_context>

<pallas_src>
import jax
import jax.numpy as jnp
from jax.experimental import pallas as pl
from jax.experimental.pallas import tpu as pltpu

BN_EPS = 1e-5


def _fused_branch_kernel(x_ref, w1t_ref, gb_ref, w2t_ref, b2_ref, out_ref):
    """One branch per grid step: Linear -> BatchNorm1d(train) -> ReLU -> Linear -> Tanh.

    Shapes inside the kernel (branch axis squeezed away by BlockSpec):
      x_ref   : (B, F_in)     bf16
      w1t_ref : (F_in, 2048)  bf16   (already transposed at init)
      gb_ref  : (2, 2048)     f32    row 0 = gamma, row 1 = beta
      w2t_ref : (2048, H)     bf16
      b2_ref  : (1, H)        f32
      out_ref : (B, H)        f32
    """
    # ---- Linear 1 (MXU, bf16 in / f32 accumulate). Bias omitted: it cancels in BN. ----
    h = jnp.dot(x_ref[...], w1t_ref[...], preferred_element_type=jnp.float32)  # (B, 2048)

    # ---- BatchNorm1d (training mode: batch statistics, biased variance) --------------
    mean = jnp.mean(h, axis=0, keepdims=True)                     # (1, 2048)
    centered = h - mean
    var = jnp.mean(centered * centered, axis=0, keepdims=True)    # (1, 2048)
    gamma = gb_ref[0:1, :]
    beta = gb_ref[1:2, :]
    scale = gamma * jax.lax.rsqrt(var + BN_EPS)                   # (1, 2048) — gamma folded in
    h = centered * scale + beta

    # ---- ReLU -------------------------------------------------------------------------
    h = jnp.maximum(h, 0.0)

    # ---- Linear 2 (MXU, bf16 in / f32 accumulate) + Tanh -------------------------------
    z = jnp.dot(h.astype(jnp.bfloat16), w2t_ref[...], preferred_element_type=jnp.float32)
    z = z + b2_ref[...]
    out_ref[...] = jnp.tanh(z)


def _init_branch_params(key, in_features, mid_features, hidden_size):
    """PyTorch-default Linear init (uniform +/- 1/sqrt(fan_in)); BatchNorm1d defaults."""
    k1, k2, k3, k4 = jax.random.split(key, 4)
    lim1 = 1.0 / jnp.sqrt(in_features)
    w1 = jax.random.uniform(k1, (mid_features, in_features), jnp.float32, -lim1, lim1)
    b1 = jax.random.uniform(k2, (mid_features,), jnp.float32, -lim1, lim1)
    gamma = jnp.ones((mid_features,), jnp.float32)
    beta = jnp.zeros((mid_features,), jnp.float32)
    lim2 = 1.0 / jnp.sqrt(mid_features)
    w2 = jax.random.uniform(k3, (hidden_size, mid_features), jnp.float32, -lim2, lim2)
    b2 = jax.random.uniform(k4, (hidden_size,), jnp.float32, -lim2, lim2)
    return (w1, b1, gamma, beta, w2, b2)


def prepare_fused_params(enc_params, dec_params):
    """One-time (outside jit) transpose / cast / stack of both branches' parameters.

    Inputs of the two branches may have different widths; the narrower W1^T is
    zero-padded along its input dimension so both branches share one stacked layout
    (zero rows contribute nothing to the matmul).
    Note: Linear-1 biases (b1) are intentionally dropped — they cancel under BatchNorm.
    """
    (w1e, _b1e, ge, be, w2e, b2e) = enc_params
    (w1d, _b1d, gd, bd, w2d, b2d) = dec_params
    in_pad = max(w1e.shape[1], w1d.shape[1])

    def pad_w1t(w1):
        w1t = w1.T  # (in_features, 2048)
        if w1t.shape[0] < in_pad:
            w1t = jnp.pad(w1t, ((0, in_pad - w1t.shape[0]), (0, 0)))
        return w1t

    w1t = jnp.stack([pad_w1t(w1e), pad_w1t(w1d)]).astype(jnp.bfloat16)        # (2, in_pad, 2048)
    gb = jnp.stack([jnp.stack([ge, be]), jnp.stack([gd, bd])]).astype(jnp.float32)  # (2, 2, 2048)
    w2t = jnp.stack([w2e.T, w2d.T]).astype(jnp.bfloat16)                      # (2, 2048, H)
    b2 = jnp.stack([b2e.reshape(1, -1), b2d.reshape(1, -1)]).astype(jnp.float32)    # (2, 1, H)
    return (w1t, gb, w2t, b2)


@jax.jit
def autoencoder_forward(x, y, w1t, gb, w2t, b2):
    in_pad = w1t.shape[1]
    mid = w1t.shape[2]
    hidden = w2t.shape[2]
    batch = x.shape[0]

    def pad_in(a):
        if a.shape[1] < in_pad:
            a = jnp.pad(a, ((0, 0), (0, in_pad - a.shape[1])))
        return a

    xy = jnp.stack([pad_in(x), pad_in(y)]).astype(jnp.bfloat16)               # (2, B, in_pad)

    out = pl.pallas_call(
        _fused_branch_kernel,
        out_shape=jax.ShapeDtypeStruct((2, batch, hidden), jnp.float32),
        grid=(2,),
        in_specs=[
            pl.BlockSpec((None, batch, in_pad), lambda b: (b, 0, 0)),
            pl.BlockSpec((None, in_pad, mid), lambda b: (b, 0, 0)),
            pl.BlockSpec((None, 2, mid), lambda b: (b, 0, 0)),
            pl.BlockSpec((None, mid, hidden), lambda b: (b, 0, 0)),
            pl.BlockSpec((None, 1, hidden), lambda b: (b, 0, 0)),
        ],
        out_specs=pl.BlockSpec((None, batch, hidden), lambda b: (b, 0, 0)),
        compiler_params=pltpu.CompilerParams(
            dimension_semantics=("parallel",),  # 2 independent branches → 2 TCs on v7x
        ),
    )(xy, w1t, gb, w2t, b2)

    return out[0], out[1]


if __name__ == "__main__":
    # Small shapes consistent with the module (width 2048 kept as in the reference).
    batch = 8
    input_size = 64      # encoder input features
    input_size2 = 64     # decoder input features
    mid = 2048           # width of first Linear / BatchNorm1d
    hidden_size = 128

    key = jax.random.PRNGKey(0)
    kx, ky, kenc, kdec = jax.random.split(key, 4)

    x = jax.random.normal(kx, (batch, input_size), jnp.float32)
    y = jax.random.normal(ky, (batch, input_size2), jnp.float32)

    enc_params = _init_branch_params(kenc, input_size, mid, hidden_size)
    dec_params = _init_branch_params(kdec, input_size2, mid, hidden_size)

    # One-time parameter preparation (transpose + bf16 cast + stacking) — NOT per call.
    fused_params = prepare_fused_params(enc_params, dec_params)

    encoded, decoded = autoencoder_forward(x, y, *fused_params)
    jax.block_until_ready((encoded, decoded))

    assert encoded.shape == (batch, hidden_size)
    assert decoded.shape == (batch, hidden_size)
    assert bool(jnp.all(jnp.isfinite(encoded))) and bool(jnp.all(jnp.isfinite(decoded)))
    print("KERNEL_OK")
</pallas_src>

<mosaic_0001>
module attributes {stable_mosaic.version = 11 : i64} {
  func.func @_fused_branch_kernel(%arg0: i32, %arg1: memref<1x8x64xbf16, #tpu.memory_space<vmem>>, %arg2: memref<1x64x2048xbf16, #tpu.memory_space<vmem>>, %arg3: memref<1x2x2048xf32, #tpu.memory_space<vmem>>, %arg4: memref<1x2048x128xbf16, #tpu.memory_space<vmem>>, %arg5: memref<1x1x128xf32, #tpu.memory_space<vmem>>, %arg6: memref<1x8x128xf32, #tpu.memory_space<vmem>>) attributes {dimension_semantics = [#tpu.dimension_semantics<parallel>], iteration_bounds = array<i64: 2>, scalar_prefetch = 0 : i64, scratch_operands = 0 : i64, tpu.core_type = #tpu.core_type<tc>, window_params = [{transform_indices = @transform_0, window_bounds = array<i64: 1, 8, 64>}, {transform_indices = @transform_1, window_bounds = array<i64: 1, 64, 2048>}, {transform_indices = @transform_2, window_bounds = array<i64: 1, 2, 2048>}, {transform_indices = @transform_3, window_bounds = array<i64: 1, 2048, 128>}, {transform_indices = @transform_4, window_bounds = array<i64: 1, 1, 128>}, {transform_indices = @transform_5, window_bounds = array<i64: 1, 8, 128>}]} {
    %c0 = arith.constant 0 : index
    %c0_0 = arith.constant 0 : index
    %c0_1 = arith.constant 0 : index
    %0 = vector.load %arg1[%c0, %c0_0, %c0_1] : memref<1x8x64xbf16, #tpu.memory_space<vmem>>, vector<1x8x64xbf16>
    %1 = vector.shape_cast %0 : vector<1x8x64xbf16> to vector<8x64xbf16>
    %c0_2 = arith.constant 0 : index
    %c0_3 = arith.constant 0 : index
    %c0_4 = arith.constant 0 : index
    %2 = vector.load %arg2[%c0_2, %c0_3, %c0_4] : memref<1x64x2048xbf16, #tpu.memory_space<vmem>>, vector<1x64x2048xbf16>
    %3 = vector.shape_cast %2 : vector<1x64x2048xbf16> to vector<64x2048xbf16>
    %cst = arith.constant dense<0.000000e+00> : vector<8x2048xf32>
    %4 = tpu.matmul %1, %3, %cst {dimension_numbers = #tpu.dot_dimension_numbers<[1], [0], [0], [1], [0, 0, 1, 1], [], []>} : vector<8x64xbf16>, vector<64x2048xbf16>, vector<8x2048xf32> -> vector<8x2048xf32>
    %cst_5 = arith.constant dense<0.000000e+00> : vector<2048xf32>
    %5 = vector.multi_reduction <add>, %4, %cst_5 [0] : vector<8x2048xf32> to vector<2048xf32>
    %6 = vector.shape_cast %5 : vector<2048xf32> to vector<1x2048xf32>
    %cst_6 = arith.constant 8.000000e+00 : f32
    %7 = vector.broadcast %cst_6 : f32 to vector<1x2048xf32>
    %8 = arith.divf %6, %7 : vector<1x2048xf32>
    %9 = vector.broadcast %8 : vector<1x2048xf32> to vector<8x2048xf32>
    %10 = arith.subf %4, %9 : vector<8x2048xf32>
    %11 = arith.mulf %10, %10 : vector<8x2048xf32>
    %cst_7 = arith.constant dense<0.000000e+00> : vector<2048xf32>
    %12 = vector.multi_reduction <add>, %11, %cst_7 [0] : vector<8x2048xf32> to vector<2048xf32>
    %13 = vector.shape_cast %12 : vector<2048xf32> to vector<1x2048xf32>
    %cst_8 = arith.constant 8.000000e+00 : f32
    %14 = vector.broadcast %cst_8 : f32 to vector<1x2048xf32>
    %15 = arith.divf %13, %14 : vector<1x2048xf32>
    %c0_9 = arith.constant 0 : index
    %c0_10 = arith.constant 0 : index
    %c0_11 = arith.constant 0 : index
    %16 = vector.load %arg3[%c0_9, %c0_10, %c0_11] : memref<1x2x2048xf32, #tpu.memory_space<vmem>>, vector<1x1x2048xf32>
    %17 = vector.shape_cast %16 : vector<1x1x2048xf32> to vector<1x2048xf32>
    %c0_12 = arith.constant 0 : index
    %c1 = arith.constant 1 : index
    %c0_13 = arith.constant 0 : index
    %18 = vector.load %arg3[%c0_12, %c1, %c0_13] : memref<1x2x2048xf32, #tpu.memory_space<vmem>>, vector<1x1x2048xf32>
    %19 = vector.shape_cast %18 : vector<1x1x2048xf32> to vector<1x2048xf32>
    %cst_14 = arith.constant 9.99999974E-6 : f32
    %20 = vector.broadcast %cst_14 : f32 to vector<1x2048xf32>
    %21 = arith.addf %15, %20 : vector<1x2048xf32>
    %22 = math.rsqrt %21 : vector<1x2048xf32>
    %23 = arith.mulf %17, %22 : vector<1x2048xf32>
    %24 = vector.broadcast %23 : vector<1x2048xf32> to vector<8x2048xf32>
    %25 = arith.mulf %10, %24 : vector<8x2048xf32>
    %26 = vector.broadcast %19 : vector<1x2048xf32> to vector<8x2048xf32>
    %27 = arith.addf %25, %26 : vector<8x2048xf32>
    %cst_15 = arith.constant 0.000000e+00 : f32
    %28 = vector.broadcast %cst_15 : f32 to vector<8x2048xf32>
    %29 = arith.maximumf %27, %28 : vector<8x2048xf32>
    %30 = arith.truncf %29 : vector<8x2048xf32> to vector<8x2048xbf16>
    %c0_16 = arith.constant 0 : index
    %c0_17 = arith.constant 0 : index
    %c0_18 = arith.constant 0 : index
    %31 = vector.load %arg4[%c0_16, %c0_17, %c0_18] : memref<1x2048x128xbf16, #tpu.memory_space<vmem>>, vector<1x2048x128xbf16>
    %32 = vector.shape_cast %31 : vector<1x2048x128xbf16> to vector<2048x128xbf16>
    %cst_19 = arith.constant dense<0.000000e+00> : vector<8x128xf32>
    %33 = tpu.matmul %30, %32, %cst_19 {dimension_numbers = #tpu.dot_dimension_numbers<[1], [0], [0], [1], [0, 0, 1, 1], [], []>} : vector<8x2048xbf16>, vector<2048x128xbf16>, vector<8x128xf32> -> vector<8x128xf32>
    %c0_20 = arith.constant 0 : index
    %c0_21 = arith.constant 0 : index
    %c0_22 = arith.constant 0 : index
    %34 = vector.load %arg5[%c0_20, %c0_21, %c0_22] : memref<1x1x128xf32, #tpu.memory_space<vmem>>, vector<1x1x128xf32>
    %35 = vector.shape_cast %34 : vector<1x1x128xf32> to vector<1x128xf32>
    %36 = vector.broadcast %35 : vector<1x128xf32> to vector<8x128xf32>
    %37 = arith.addf %33, %36 : vector<8x128xf32>
    %38 = math.tanh %37 : vector<8x128xf32>
    %c0_23 = arith.constant 0 : index
    %c0_24 = arith.constant 0 : index
    %c0_25 = arith.constant 0 : index
    %39 = vector.load %arg6[%c0_23, %c0_24, %c0_25] : memref<1x8x128xf32, #tpu.memory_space<vmem>>, vector<1x8x128xf32>
    %40 = vector.shape_cast %39 : vector<1x8x128xf32> to vector<8x128xf32>
    %41 = vector.shape_cast %38 : vector<8x128xf32> to vector<1x8x128xf32>
    tpu.vector_store %arg6[%c0_23, %c0_24, %c0_25], %41 {strides = array<i32>} : memref<1x8x128xf32, #tpu.memory_space<vmem>>, vector<1x8x128xf32>,
    return
  }
  func.func @transform_0(%arg0: i32) -> (i32, i32, i32) {
    %c0_i32 = arith.constant 0 : i32
    %c0_i32_0 = arith.constant 0 : i32
    %c0_i32_1 = arith.constant 0 : i32
    return %arg0, %c0_i32, %c0_i32_0 : i32, i32, i32
  }
  func.func @transform_1(%arg0: i32) -> (i32, i32, i32) {
    %c0_i32 = arith.constant 0 : i32
    %c0_i32_0 = arith.constant 0 : i32
    %c0_i32_1 = arith.constant 0 : i32
    return %arg0, %c0_i32, %c0_i32_0 : i32, i32, i32
  }
  func.func @transform_2(%arg0: i32) -> (i32, i32, i32) {
    %c0_i32 = arith.constant 0 : i32
    %c0_i32_0 = arith.constant 0 : i32
    %c0_i32_1 = arith.constant 0 : i32
    return %arg0, %c0_i32, %c0_i32_0 : i32, i32, i32
  }
  func.func @transform_3(%arg0: i32) -> (i32, i32, i32) {
    %c0_i32 = arith.constant 0 : i32
    %c0_i32_0 = arith.constant 0 : i32
    %c0_i32_1 = arith.constant 0 : i32
    return %arg0, %c0_i32, %c0_i32_0 : i32, i32, i32
  }
  func.func @transform_4(%arg0: i32) -> (i32, i32, i32) {
    %c0_i32 = arith.constant 0 : i32
    %c0_i32_0 = arith.constant 0 : i32
    %c0_i32_1 = arith.constant 0 : i32
    return %arg0, %c0_i32, %c0_i32_0 : i32, i32, i32
  }
  func.func @transform_5(%arg0: i32) -> (i32, i32, i32) {
    %c0_i32 = arith.constant 0 : i32
    %c0_i32_0 = arith.constant 0 : i32
    %c0_i32_1 = arith.constant 0 : i32
    return %arg0, %c0_i32, %c0_i32_0 : i32, i32, i32
  }
}

</mosaic_0001>

<llo_original>
// kernel: autoencoder_forward.1
$region0: #{autoencoder_forward.1}
  #allocation0 [shape = 'u32[]', space=smem, size = 0x4, offset = 0x4, fixed_abs, tag = 'smem constant byte address 0x4 - core index']
  #allocation1 [shape = 'u32[72,128]{1,0:T(1,128)}', space=vmem, size = 0x9000, scoped, tag = 'internal scratch']
  %s0 = inlined_call_operand.vmem [shape: bf16[2,8,64], index: 0, kind: input, shape index: {}]
  %s1 = inlined_call_operand.hbm [shape: bf16[2,64,2048], index: 1, kind: input, shape index: {}]
  %s2 = inlined_call_operand.hbm [shape: f32[2,2,2048], index: 2, kind: input, shape index: {}]
  %s3 = inlined_call_operand.hbm [shape: bf16[2,2048,128], index: 3, kind: input, shape index: {}]
  %s4 = inlined_call_operand.vmem [shape: f32[2,1,128], index: 4, kind: input, shape index: {}]
  %s5 = inlined_call_operand.vmem [shape: f32[2,8,128], index: 5, kind: output, shape index: {}]
  %s6 = sld [smem:[#allocation0]]
  $region65: #{autoencoder_forward.1} parent=0
    _
  %s8 = ssub.s32 1, %s6
  %s9 = scalar_select 0, %s8, %s6
  $region1: #{autoencoder_forward.1} parent=0
    #allocation2 [shape = 'u8[524288]{0}', space=vmem, size = 0x80000, scoped, tag = 'input window, operand 1']
    #allocation3 [shape = 's32[2]{0}', space=sflag, size = 0x8, scoped, tag = 'scoped memory for autoencoder_forward.1']
    #allocation4 [shape = 'u8[32768]{0}', space=vmem, size = 0x8000, scoped, tag = 'input window, operand 2']
    #allocation5 [shape = 's32[2]{0}', space=sflag, size = 0x8, scoped, tag = 'scoped memory for autoencoder_forward.1']
    #allocation6 [shape = 'u8[1048576]{0}', space=vmem, size = 0x100000, scoped, tag = 'input window, operand 3']
    %10 = vsyncpa [#allocation3], 0
    %s11 = scalar_lea.sflag [#allocation3], 1
    %12 = vsyncpa %s11, 0
    %13 = vsyncpa [#allocation5], 0
    %s14 = scalar_lea.sflag [#allocation5], 1
    %15 = vsyncpa %s14, 0
    loop: start=0, step=1, limit=4
    $region2: #{autoencoder_forward.1} parent=1 // loop_pre_header
      _
    $region3: #{autoencoder_forward.1} parent=1 // loop_header
      %s17 = sphi 0, %s21
      %p18 = scmp.ge.s32.totalorder %s17, 4
      %s27 = sphi 0, %s29
      %s30 = sphi 0, %s27
      %s31 = sphi 0, %s30
      %s47 = sphi 0, %s31
      %s53 = sphi 0, %s55
      %s56 = sphi 0, %s53
      %s57 = sphi 0, %s56
      %s73 = sphi 0, %s57
      %s79 = sphi 0, %s81
      %s82 = sphi 0, %s79
      %s83 = sphi 0, %s82
      %s99 = sphi 0, %s83
      %s105 = sphi 0, %s107
      %s108 = sphi 0, %s105
      %s109 = sphi 0, %s108
      %s125 = sphi 0, %s109
      %s131 = sphi 0, %s133
      %s134 = sphi 0, %s131
      %s135 = sphi 0, %s134
      %s151 = sphi 0, %s135
      %s157 = sphi 0, %s159
      %s160 = sphi 0, %s157
      %s161 = sphi 0, %s160
      %s177 = sphi 0, %s161
    $region4: #{autoencoder_forward.1} parent=1 // loop_header_branch
      %20 = sbr.rel (%p18) target = $region8
    $region5: #{autoencoder_forward.1} parent=1 // loop_body
      %s22 = ssub.s32 %s17, 1
      %s23 = ssub.s32 %s17, 2
      %s24 = sadd.s32 %s17, 1
      %s25 = ssub.s32 %s17, %s24
      %p26 = scmp.eq.s32.totalorder %s25, 0
      %s28 = sadd.s32 %s27, 1
      %s29 = scalar_select %p26, %s27, %s28
      %p32 = pneg %p26
      %p33 = scmp.eq.s32.totalorder %s17, 1
      %p34 = por %p32, %p33
      %p35 = scmp.ne.s32.totalorder %s27, %s30
      %p36 = scmp.eq.s32.totalorder %s17, 0
      %p37 = por %p35, %p36
      %p38 = scmp.ne.s32.totalorder %s27, %s30
      %p39 = scmp.eq.s32.totalorder %s22, 1
      %p40 = por %p38, %p39
      %p41 = scmp.ne.s32.totalorder %s30, %s31
      %p42 = scmp.eq.s32.totalorder %s22, 0
      %p43 = por %p41, %p42
      %p44 = scmp.ne.s32.totalorder %s30, %s31
      %p45 = scmp.eq.s32.totalorder %s23, 1
      %p46 = por %p44, %p45
      %p48 = scmp.ne.s32.totalorder %s31, %s47
      %p49 = scmp.eq.s32.totalorder %s23, 0
      %p50 = por %p48, %p49
      %s51 = ssub.s32 %s17, %s24
      %p52 = scmp.eq.s32.totalorder %s51, 0
      %s54 = sadd.s32 %s53, 1
      %s55 = scalar_select %p52, %s53, %s54
      %p58 = pneg %p52
      %p59 = scmp.eq.s32.totalorder %s17, 1
      %p60 = por %p58, %p59
      %p61 = scmp.ne.s32.totalorder %s53, %s56
      %p62 = scmp.eq.s32.totalorder %s17, 0
      %p63 = por %p61, %p62
      %p64 = scmp.ne.s32.totalorder %s53, %s56
      %p65 = scmp.eq.s32.totalorder %s22, 1
      %p66 = por %p64, %p65
      %p67 = scmp.ne.s32.totalorder %s56, %s57
      %p68 = scmp.eq.s32.totalorder %s22, 0
      %p69 = por %p67, %p68
      %p70 = scmp.ne.s32.totalorder %s56, %s57
      %p71 = scmp.eq.s32.totalorder %s23, 1
      %p72 = por %p70, %p71
      %p74 = scmp.ne.s32.totalorder %s57, %s73
      %p75 = scmp.eq.s32.totalorder %s23, 0
      %p76 = por %p74, %p75
      %s77 = ssub.s32 %s17, %s24
      %p78 = scmp.eq.s32.totalorder %s77, 0
      %s80 = sadd.s32 %s79, 1
      %s81 = scalar_select %p78, %s79, %s80
      %p84 = pneg %p78
      %p85 = scmp.eq.s32.totalorder %s17, 1
      %p86 = por %p84, %p85
      %p87 = scmp.ne.s32.totalorder %s79, %s82
      %p88 = scmp.eq.s32.totalorder %s17, 0
      %p89 = por %p87, %p88
      %p90 = scmp.ne.s32.totalorder %s79, %s82
      %p91 = scmp.eq.s32.totalorder %s22, 1
      %p92 = por %p90, %p91
      %p93 = scmp.ne.s32.totalorder %s82, %s83
      %p94 = scmp.eq.s32.totalorder %s22, 0
      %p95 = por %p93, %p94
      %p96 = scmp.ne.s32.totalorder %s82, %s83
      %p97 = scmp.eq.s32.totalorder %s23, 1
      %p98 = por %p96, %p97
      %p100 = scmp.ne.s32.totalorder %s83, %s99
      %p101 = scmp.eq.s32.totalorder %s23, 0
      %p102 = por %p100, %p101
      %s103 = ssub.s32 %s17, %s24
      %p104 = scmp.eq.s32.totalorder %s103, 0
      %s106 = sadd.s32 %s105, 1
      %s107 = scalar_select %p104, %s105, %s106
      %p110 = pneg %p104
      %p111 = scmp.eq.s32.totalorder %s17, 1
      %p112 = por %p110, %p111
      %p113 = scmp.ne.s32.totalorder %s105, %s108
      %p114 = scmp.eq.s32.totalorder %s17, 0
      %p115 = por %p113, %p114
      %p116 = scmp.ne.s32.totalorder %s105, %s108
      %p117 = scmp.eq.s32.totalorder %s22, 1
      %p118 = por %p116, %p117
      %p119 = scmp.ne.s32.totalorder %s108, %s109
      %p120 = scmp.eq.s32.totalorder %s22, 0
      %p121 = por %p119, %p120
      %p122 = scmp.ne.s32.totalorder %s108, %s109
      %p123 = scmp.eq.s32.totalorder %s23, 1
      %p124 = por %p122, %p123
      %p126 = scmp.ne.s32.totalorder %s109, %s125
      %p127 = scmp.eq.s32.totalorder %s23, 0
      %p128 = por %p126, %p127
      %s129 = ssub.s32 %s17, %s24
      %p130 = scmp.eq.s32.totalorder %s129, 0
      %s132 = sadd.s32 %s131, 1
      %s133 = scalar_select %p130, %s131, %s132
      %p136 = pneg %p130
      %p137 = scmp.eq.s32.totalorder %s17, 1
      %p138 = por %p136, %p137
      %p139 = scmp.ne.s32.totalorder %s131, %s134
      %p140 = scmp.eq.s32.totalorder %s17, 0
      %p141 = por %p139, %p140
      %p142 = scmp.ne.s32.totalorder %s131, %s134
      %p143 = scmp.eq.s32.totalorder %s22, 1
      %p144 = por %p142, %p143
      %p145 = scmp.ne.s32.totalorder %s134, %s135
      %p146 = scmp.eq.s32.totalorder %s22, 0
      %p147 = por %p145, %p146
      %p148 = scmp.ne.s32.totalorder %s134, %s135
      %p149 = scmp.eq.s32.totalorder %s23, 1
      %p150 = por %p148, %p149
      %p152 = scmp.ne.s32.totalorder %s135, %s151
      %p153 = scmp.eq.s32.totalorder %s23, 0
      %p154 = por %p152, %p153
      %s155 = ssub.s32 %s17, %s24
      %p156 = scmp.eq.s32.totalorder %s155, 0
      %s158 = sadd.s32 %s157, 1
      %s159 = scalar_select %p156, %s157, %s158
      %p162 = pneg %p156
      %p163 = scmp.eq.s32.totalorder %s17, 1
      %p164 = por %p162, %p163
      %p165 = scmp.ne.s32.totalorder %s157, %s160
      %p166 = scmp.eq.s32.totalorder %s17, 0
      %p167 = por %p165, %p166
      %p168 = scmp.ne.s32.totalorder %s157, %s160
      %p169 = scmp.eq.s32.totalorder %s22, 1
      %p170 = por %p168, %p169
      %p171 = scmp.ne.s32.totalorder %s160, %s161
      %p172 = scmp.eq.s32.totalorder %s22, 0
      %p173 = por %p171, %p172
      %p174 = scmp.ne.s32.totalorder %s160, %s161
      %p175 = scmp.eq.s32.totalorder %s23, 1
      %p176 = por %p174, %p175
      %p178 = scmp.ne.s32.totalorder %s161, %s177
      %p179 = scmp.eq.s32.totalorder %s23, 0
      %p180 = por %p178, %p179
      %p181 = scmp.le.s32.totalorder 1, %s17
      %p182 = scmp.lt.s32.totalorder %s17, 3
      %p183 = pnand %p181, %p182
      %p184 = pneg %p183
      // Predicated region
      $region9: #{autoencoder_forward.1} parent=5 // pred_check
        _
      $region10: #{autoencoder_forward.1} parent=5 // pred_check_branch
        %186 = sbr.rel (%p183) target = $region12
      $region11: #{autoencoder_forward.1} parent=5 // pred_region
        %s187 = ssub.s32 %s17, 1
      $region12: #{autoencoder_forward.1} parent=5 // pred_fallthru
        _
      %p188 = scmp.lt.s32.totalorder %s17, 2
      // Predicated region
      $region13: #{autoencoder_forward.1} parent=5 // pred_check
        %p189 = pneg %p188
      $region14: #{autoencoder_forward.1} parent=5 // pred_check_branch
        %191 = sbr.rel (%p189) target = $region16
      $region15: #{autoencoder_forward.1} parent=5 // pred_region
        // Predicated region
        $region17: #{autoencoder_forward.1} parent=15 // pred_check
          %p192 = pneg %p37
        $region18: #{autoencoder_forward.1} parent=15 // pred_check_branch
          %194 = sbr.rel (%p192) target = $region20
        $region19: #{autoencoder_forward.1} parent=15 // pred_region
          %p195 = scmp.lt.s32.totalorder %s17, 1
          %s196 = scalar_select %p195, %s17, 1
          %s197 = smul.addr %s196, 4
          %s198 = scalar_lea.vmem %s0, %s197
        $region20: #{autoencoder_forward.1} parent=15 // pred_fallthru
          _
        // Predicated region
        $region21: #{autoencoder_forward.1} parent=15 // pred_check
          %p199 = pneg %p63
        $region22: #{autoencoder_forward.1} parent=15 // pred_check_branch
          %201 = sbr.rel (%p199) target = $region24
        $region23: #{autoencoder_forward.1} parent=15 // pred_region
          %s202 = sand.u32 %s53, 1
          %s203 = scalar_lea.sflag [#allocation3], %s202
          %s204 = sand.u32 %s53, 1
          %s205 = smul.addr %s204, 512
          %s206 = scalar_lea.vmem [#allocation2], %s205
          %208 = vsyncadd %s203, 0
          %s209 = smul.addr %s17, 128
          %s210 = smul.addr %s209, 4
          %s211 = scalar_lea.hbm %s1, %s210
          %s212 = sshll.u32 %s211, 4
          %s213 = int_to_ptr.hbm [resolvable:$true] %s212
          %s214 = sshll.u32 %s206, 4
          %s215 = int_to_ptr.vmem [resolvable:$true] %s214
          %220 = dma.hbm_to_vmem [thread:$0]  %s213, 8192, %s215, %s203, 1024, 1024, 64
        $region24: #{autoencoder_forward.1} parent=15 // pred_fallthru
          _
        // Predicated region
        $region25: #{autoencoder_forward.1} parent=15 // pred_check
          %p221 = pneg %p89
        $region26: #{autoencoder_forward.1} parent=15 // pred_check_branch
          %223 = sbr.rel (%p221) target = $region28
        $region27: #{autoencoder_forward.1} parent=15 // pred_region
          %s224 = sand.u32 %s17, 1
          %s225 = scalar_lea.sflag [#allocation5], %s224
          %s226 = sand.u32 %s79, 1
          %s227 = smul.addr %s226, 32
          %s228 = scalar_lea.vmem [#allocation4], %s227
          %230 = vsyncadd %s225, 0
          %s231 = smul.addr %s17, 16
          %s232 = smul.addr %s231, 2
          %s233 = scalar_lea.hbm %s2, %s232
          %s235 = sshll.u32 %s233, 4
          %s236 = int_to_ptr.hbm [resolvable:$true] %s235
          %s237 = sshll.u32 %s228, 4
          %s238 = int_to_ptr.vmem [resolvable:$true] %s237
          %240 = dma.hbm_to_vmem [thread:$0]  %s236, 512, %s238, %s225
        $region28: #{autoencoder_forward.1} parent=15 // pred_fallthru
          _
        // Predicated region
        $region29: #{autoencoder_forward.1} parent=15 // pred_check
          %p241 = pneg %p115
        $region30: #{autoencoder_forward.1} parent=15 // pred_check_branch
          %243 = sbr.rel (%p241) target = $region32
        $region31: #{autoencoder_forward.1} parent=15 // pred_region
          %s244 = sand.u32 %s17, 1
          %s245 = scalar_lea.sflag [#allocation5], %s244
          %s246 = sand.u32 %s105, 1
          %s247 = smul.addr %s246, 1024
          %s248 = scalar_lea.vmem [#allocation6], %s247
          %250 = vsyncadd %s245, 0
          %s251 = smul.addr %s17, 256
          %s252 = smul.addr %s251, 4
          %s253 = scalar_lea.hbm %s3, %s252
          %s254 = sshll.u32 %s253, 4
          %s255 = int_to_ptr.hbm [resolvable:$true] %s254
          %s256 = sshll.u32 %s248, 4
          %s257 = int_to_ptr.vmem [resolvable:$true] %s256
          %262 = dma.hbm_to_vmem [thread:$0]  %s255, 16384, %s257, %s245, 64, 64, 4
        $region32: #{autoencoder_forward.1} parent=15 // pred_fallthru
          _
        // Predicated region
        $region33: #{autoencoder_forward.1} parent=15 // pred_check
          %p263 = pneg %p141
        $region34: #{autoencoder_forward.1} parent=15 // pred_check_branch
          %265 = sbr.rel (%p263) target = $region36
        $region35: #{autoencoder_forward.1} parent=15 // pred_region
          %p266 = scmp.lt.s32.totalorder %s17, 1
          %s267 = scalar_select %p266, %s17, 1
          %s268 = scalar_lea.vmem %s4, %s267
        $region36: #{autoencoder_forward.1} parent=15 // pred_fallthru
          _
      $region16: #{autoencoder_forward.1} parent=5 // pred_fallthru
        _
      %p269 = scmp.le.s32.totalorder 1, %s17
      %p270 = scmp.lt.s32.totalorder %s17, 3
      %p271 = pnand %p269, %p270
      %p272 = pneg %p271
      // Predicated region
      $region37: #{autoencoder_forward.1} parent=5 // pred_check
        _
      $region38: #{autoencoder_forward.1} parent=5 // pred_check_branch
        %274 = sbr.rel (%p271) target = $region40
      $region39: #{autoencoder_forward.1} parent=5 // pred_region
        %s275 = ssub.s32 %s17, 1
        %s276 = sand.u32 %s56, 1
        %s277 = scalar_lea.sflag [#allocation3], %s276
        %s278 = sand.u32 %s56, 1
        %s279 = smul.addr %s278, 512
        %s280 = scalar_lea.vmem [#allocation2], %s279
        // Predicated region
        $region41: #{autoencoder_forward.1} parent=39 // pred_check
          %p281 = pneg %p69
        $region42: #{autoencoder_forward.1} parent=39 // pred_check_branch
          %283 = sbr.rel (%p281) target = $region44
        $region43: #{autoencoder_forward.1} parent=39 // pred_region
          %285 = dma.done %s277, 8192
        $region44: #{autoencoder_forward.1} parent=39 // pred_fallthru
          _
        %s286 = sand.u32 %s22, 1
        %s287 = scalar_lea.sflag [#allocation5], %s286
        %s288 = sand.u32 %s82, 1
        %s289 = smul.addr %s288, 32
        %s290 = scalar_lea.vmem [#allocation4], %s289
        // Predicated region
        $region45: #{autoencoder_forward.1} parent=39 // pred_check
          %p291 = pneg %p95
        $region46: #{autoencoder_forward.1} parent=39 // pred_check_branch
          %293 = sbr.rel (%p291) target = $region48
        $region47: #{autoencoder_forward.1} parent=39 // pred_region
          %295 = dma.done %s287, 512
        $region48: #{autoencoder_forward.1} parent=39 // pred_fallthru
          _
        %s296 = sand.u32 %s22, 1
        %s297 = scalar_lea.sflag [#allocation5], %s296
        %s298 = sand.u32 %s108, 1
        %s299 = smul.addr %s298, 1024
        %s300 = scalar_lea.vmem [#allocation6], %s299
        // Predicated region
        $region49: #{autoencoder_forward.1} parent=39 // pred_check
          %p301 = pneg %p121
        $region50: #{autoencoder_forward.1} parent=39 // pred_check_branch
          %303 = sbr.rel (%p301) target = $region52
        $region51: #{autoencoder_forward.1} parent=39 // pred_region
          %305 = dma.done %s297, 16384
        $region52: #{autoencoder_forward.1} parent=39 // pred_fallthru
          _
        %p306 = scmp.lt.s32.totalorder %s22, 1
        %s307 = scalar_select %p306, %s22, 1
        %s308 = smul.addr %s307, 4
        %s309 = scalar_lea.vmem %s0, %s308
        %p310 = pneg %p43
        %p311 = pneg %p40
        %s312 = sand.u32 %s56, 1
        %s313 = scalar_lea.sflag [#allocation3], %s312
        %s314 = sand.u32 %s56, 1
        %s315 = smul.addr %s314, 512
        %s316 = scalar_lea.vmem [#allocation2], %s315
        %p317 = pneg %p69
        %p318 = pneg %p66
        %s319 = sand.u32 %s22, 1
        %s320 = scalar_lea.sflag [#allocation5], %s319
        %s321 = sand.u32 %s82, 1
        %s322 = smul.addr %s321, 32
        %s323 = scalar_lea.vmem [#allocation4], %s322
        %p324 = pneg %p95
        %p325 = pneg %p92
        %s326 = sand.u32 %s22, 1
        %s327 = scalar_lea.sflag [#allocation5], %s326
        %s328 = sand.u32 %s108, 1
        %s329 = smul.addr %s328, 1024
        %s330 = scalar_lea.vmem [#allocation6], %s329
        %p331 = pneg %p121
        %p332 = pneg %p118
        %p333 = scmp.lt.s32.totalorder %s22, 1
        %s334 = scalar_select %p333, %s22, 1
        %s335 = scalar_lea.vmem %s4, %s334
        %p336 = pneg %p147
        %p337 = pneg %p144
        %p338 = pneg %p173
        %p339 = pneg %p170
        %p340 = scmp.lt.s32.totalorder %s22, 1
        %s341 = scalar_select %p340, %s22, 1
        %s342 = smul.addr %s341, 8
        %s343 = scalar_lea.vmem %s5, %s342
        %p344 = scmp.lt.s32.totalorder %s22, 1
        %s345 = scalar_select %p344, %s22, 1
        %s346 = smul.addr %s345, 4
        %s347 = scalar_lea.vmem %s0, %s346
        %p348 = scmp.lt.s32.totalorder %s22, 1
        %s349 = scalar_select %p348, %s22, 1
        %s350 = scalar_lea.vmem %s4, %s349
        %p351 = scmp.lt.s32.totalorder %s22, 1
        %s352 = scalar_select %p351, %s22, 1
        %s353 = smul.addr %s352, 8
        %s354 = scalar_lea.vmem %s5, %s353
        %v356 = vld [vmem:[%s347] sm:$0xf]
        %v357 = vld [vmem:[%s280] sm:$0xff]
        %v358 = vld [vmem:[%s280 + $0x8] sm:$0xff]
        %v359 = vld [vmem:[%s280 + $0x10] sm:$0xff]
        %v360 = vld [vmem:[%s280 + $0x18] sm:$0xff]
        %v361 = vld [vmem:[%s280 + $0x20] sm:$0xff]
        %v362 = vld [vmem:[%s280 + $0x28] sm:$0xff]
        %v363 = vld [vmem:[%s280 + $0x30] sm:$0xff]
        %v364 = vld [vmem:[%s280 + $0x38] sm:$0xff]
        %v365 = vld [vmem:[%s280 + $0x40] sm:$0xff]
        %v366 = vld [vmem:[%s280 + $0x48] sm:$0xff]
        %v367 = vld [vmem:[%s280 + $0x50] sm:$0xff]
        %v368 = vld [vmem:[%s280 + $0x58] sm:$0xff]
        %v369 = vld [vmem:[%s280 + $0x60] sm:$0xff]
        %v370 = vld [vmem:[%s280 + $0x68] sm:$0xff]
        %v371 = vld [vmem:[%s280 + $0x70] sm:$0xff]
        %v372 = vld [vmem:[%s280 + $0x78] sm:$0xff]
        %v373 = vld [vmem:[%s280 + $0x80] sm:$0xff]
        %v374 = vld [vmem:[%s280 + $0x88] sm:$0xff]
        %v375 = vld [vmem:[%s280 + $0x90] sm:$0xff]
        %v376 = vld [vmem:[%s280 + $0x98] sm:$0xff]
        %v377 = vld [vmem:[%s280 + $0xa0] sm:$0xff]
        %v378 = vld [vmem:[%s280 + $0xa8] sm:$0xff]
        %v379 = vld [vmem:[%s280 + $0xb0] sm:$0xff]
        %v380 = vld [vmem:[%s280 + $0xb8] sm:$0xff]
        %v381 = vld [vmem:[%s280 + $0xc0] sm:$0xff]
        %v382 = vld [vmem:[%s280 + $0xc8] sm:$0xff]
        %v383 = vld [vmem:[%s280 + $0xd0] sm:$0xff]
        %v384 = vld [vmem:[%s280 + $0xd8] sm:$0xff]
        %v385 = vld [vmem:[%s280 + $0xe0] sm:$0xff]
        %v386 = vld [vmem:[%s280 + $0xe8] sm:$0xff]
        %v387 = vld [vmem:[%s280 + $0xf0] sm:$0xff]
        %v388 = vld [vmem:[%s280 + $0xf8] sm:$0xff]
        %v389 = vld [vmem:[%s280 + $0x100] sm:$0xff]
        %v390 = vld [vmem:[%s280 + $0x108] sm:$0xff]
        %v391 = vld [vmem:[%s280 + $0x110] sm:$0xff]
        %v392 = vld [vmem:[%s280 + $0x118] sm:$0xff]
        %v393 = vld [vmem:[%s280 + $0x120] sm:$0xff]
        %v394 = vld [vmem:[%s280 + $0x128] sm:$0xff]
        %v395 = vld [vmem:[%s280 + $0x130] sm:$0xff]
        %v396 = vld [vmem:[%s280 + $0x138] sm:$0xff]
        %v397 = vld [vmem:[%s280 + $0x140] sm:$0xff]
        %v398 = vld [vmem:[%s280 + $0x148] sm:$0xff]
        %v399 = vld [vmem:[%s280 + $0x150] sm:$0xff]
        %v400 = vld [vmem:[%s280 + $0x158] sm:$0xff]
        %v401 = vld [vmem:[%s280 + $0x160] sm:$0xff]
        %v402 = vld [vmem:[%s280 + $0x168] sm:$0xff]
        %v403 = vld [vmem:[%s280 + $0x170] sm:$0xff]
        %v404 = vld [vmem:[%s280 + $0x178] sm:$0xff]
        %v405 = vld [vmem:[%s280 + $0x180] sm:$0xff]
        %v406 = vld [vmem:[%s280 + $0x188] sm:$0xff]
        %v407 = vld [vmem:[%s280 + $0x190] sm:$0xff]
        %v408 = vld [vmem:[%s280 + $0x198] sm:$0xff]
        %v409 = vld [vmem:[%s280 + $0x1a0] sm:$0xff]
        %v410 = vld [vmem:[%s280 + $0x1a8] sm:$0xff]
        %v411 = vld [vmem:[%s280 + $0x1b0] sm:$0xff]
        %v412 = vld [vmem:[%s280 + $0x1b8] sm:$0xff]
        %v413 = vld [vmem:[%s280 + $0x1c0] sm:$0xff]
        %v414 = vld [vmem:[%s280 + $0x1c8] sm:$0xff]
        %v415 = vld [vmem:[%s280 + $0x1d0] sm:$0xff]
        %v416 = vld [vmem:[%s280 + $0x1d8] sm:$0xff]
        %v417 = vld [vmem:[%s280 + $0x1e0] sm:$0xff]
        %v418 = vld [vmem:[%s280 + $0x1e8] sm:$0xff]
        %v419 = vld [vmem:[%s280 + $0x1f0] sm:$0xff]
        %v420 = vld [vmem:[%s280 + $0x1f8] sm:$0xff]
        %v485 = vunpack.c.l.b16 %v357
        %v486 = vunpack.c.h.b16 %v357
        %v487 = vunpack.c.l.b16 %v358
        %v488 = vunpack.c.h.b16 %v358
        %v489 = vunpack.c.l.b16 %v359
        %v490 = vunpack.c.h.b16 %v359
        %v491 = vunpack.c.l.b16 %v360
        %v492 = vunpack.c.h.b16 %v360
        %v493 = vunpack.c.l.b16 %v361
        %v494 = vunpack.c.h.b16 %v361
        %v495 = vunpack.c.l.b16 %v362
        %v496 = vunpack.c.h.b16 %v362
        %v497 = vunpack.c.l.b16 %v363
        %v498 = vunpack.c.h.b16 %v363
        %v499 = vunpack.c.l.b16 %v364
        %v500 = vunpack.c.h.b16 %v364
        %v501 = vunpack.c.l.b16 %v365
        %v502 = vunpack.c.h.b16 %v365
        %v503 = vunpack.c.l.b16 %v366
        %v504 = vunpack.c.h.b16 %v366
        %v505 = vunpack.c.l.b16 %v367
        %v506 = vunpack.c.h.b16 %v367
        %v507 = vunpack.c.l.b16 %v368
        %v508 = vunpack.c.h.b16 %v368
        %v509 = vunpack.c.l.b16 %v369
        %v510 = vunpack.c.h.b16 %v369
        %v511 = vunpack.c.l.b16 %v370
        %v512 = vunpack.c.h.b16 %v370
        %v513 = vunpack.c.l.b16 %v371
        %v514 = vunpack.c.h.b16 %v371
        %v515 = vunpack.c.l.b16 %v372
        %v516 = vunpack.c.h.b16 %v372
        %v517 = vunpack.c.l.b16 %v373
        %v518 = vunpack.c.h.b16 %v373
        %v519 = vunpack.c.l.b16 %v374
        %v520 = vunpack.c.h.b16 %v374
        %v521 = vunpack.c.l.b16 %v375
        %v522 = vunpack.c.h.b16 %v375
        %v523 = vunpack.c.l.b16 %v376
        %v524 = vunpack.c.h.b16 %v376
        %v525 = vunpack.c.l.b16 %v377
        %v526 = vunpack.c.h.b16 %v377
        %v527 = vunpack.c.l.b16 %v378
        %v528 = vunpack.c.h.b16 %v378
        %v529 = vunpack.c.l.b16 %v379
        %v530 = vunpack.c.h.b16 %v379
        %v531 = vunpack.c.l.b16 %v380
        %v532 = vunpack.c.h.b16 %v380
        %v533 = vunpack.c.l.b16 %v381
        %v534 = vunpack.c.h.b16 %v381
        %v535 = vunpack.c.l.b16 %v382
        %v536 = vunpack.c.h.b16 %v382
        %v537 = vunpack.c.l.b16 %v383
        %v538 = vunpack.c.h.b16 %v383
        %v539 = vunpack.c.l.b16 %v384
        %v540 = vunpack.c.h.b16 %v384
        %v541 = vunpack.c.l.b16 %v385
        %v542 = vunpack.c.h.b16 %v385
        %v543 = vunpack.c.l.b16 %v386
        %v544 = vunpack.c.h.b16 %v386
        %v545 = vunpack.c.l.b16 %v387
        %v546 = vunpack.c.h.b16 %v387
        %v547 = vunpack.c.l.b16 %v388
        %v548 = vunpack.c.h.b16 %v388
        %v549 = vunpack.c.l.b16 %v389
        %v550 = vunpack.c.h.b16 %v389
        %v551 = vunpack.c.l.b16 %v390
        %v552 = vunpack.c.h.b16 %v390
        %v553 = vunpack.c.l.b16 %v391
        %v554 = vunpack.c.h.b16 %v391
        %v555 = vunpack.c.l.b16 %v392
        %v556 = vunpack.c.h.b16 %v392
        %v557 = vunpack.c.l.b16 %v393
        %v558 = vunpack.c.h.b16 %v393
        %v559 = vunpack.c.l.b16 %v394
        %v560 = vunpack.c.h.b16 %v394
        %v561 = vunpack.c.l.b16 %v395
        %v562 = vunpack.c.h.b16 %v395
        %v563 = vunpack.c.l.b16 %v396
        %v564 = vunpack.c.h.b16 %v396
        %v565 = vunpack.c.l.b16 %v397
        %v566 = vunpack.c.h.b16 %v397
        %v567 = vunpack.c.l.b16 %v398
        %v568 = vunpack.c.h.b16 %v398
        %v569 = vunpack.c.l.b16 %v399
        %v570 = vunpack.c.h.b16 %v399
        %v571 = vunpack.c.l.b16 %v400
        %v572 = vunpack.c.h.b16 %v400
        %v573 = vunpack.c.l.b16 %v401
        %v574 = vunpack.c.h.b16 %v401
        %v575 = vunpack.c.l.b16 %v402
        %v576 = vunpack.c.h.b16 %v402
        %v577 = vunpack.c.l.b16 %v403
        %v578 = vunpack.c.h.b16 %v403
        %v579 = vunpack.c.l.b16 %v404
        %v580 = vunpack.c.h.b16 %v404
        %v581 = vunpack.c.l.b16 %v405
        %v582 = vunpack.c.h.b16 %v405
        %v583 = vunpack.c.l.b16 %v406
        %v584 = vunpack.c.h.b16 %v406
        %v585 = vunpack.c.l.b16 %v407
        %v586 = vunpack.c.h.b16 %v407
        %v587 = vunpack.c.l.b16 %v408
        %v588 = vunpack.c.h.b16 %v408
        %v589 = vunpack.c.l.b16 %v409
        %v590 = vunpack.c.h.b16 %v409
        %v591 = vunpack.c.l.b16 %v410
        %v592 = vunpack.c.h.b16 %v410
        %v593 = vunpack.c.l.b16 %v411
        %v594 = vunpack.c.h.b16 %v411
        %v595 = vunpack.c.l.b16 %v412
        %v596 = vunpack.c.h.b16 %v412
        %v597 = vunpack.c.l.b16 %v413
        %v598 = vunpack.c.h.b16 %v413
        %v599 = vunpack.c.l.b16 %v414
        %v600 = vunpack.c.h.b16 %v414
        %v601 = vunpack.c.l.b16 %v415
        %v602 = vunpack.c.h.b16 %v415
        %v603 = vunpack.c.l.b16 %v416
        %v604 = vunpack.c.h.b16 %v416
        %v605 = vunpack.c.l.b16 %v417
        %v606 = vunpack.c.h.b16 %v417
        %v607 = vunpack.c.l.b16 %v418
        %v608 = vunpack.c.h.b16 %v418
        %v609 = vunpack.c.l.b16 %v419
        %v610 = vunpack.c.h.b16 %v419
        %v611 = vunpack.c.l.b16 %v420
        %v612 = vunpack.c.h.b16 %v420
        %v613 = vpack.c.b16 %v501, %v485
        %v614 = vpack.c.b16 %v502, %v486
        %v615 = vpack.c.b16 %v503, %v487
        %v616 = vpack.c.b16 %v504, %v488
        %v617 = vpack.c.b16 %v505, %v489
        %v618 = vpack.c.b16 %v506, %v490
        %v619 = vpack.c.b16 %v507, %v491
        %v620 = vpack.c.b16 %v508, %v492
        %v621 = vpack.c.b16 %v509, %v493
        %v622 = vpack.c.b16 %v510, %v494
        %v623 = vpack.c.b16 %v511, %v495
        %v624 = vpack.c.b16 %v512, %v496
        %v625 = vpack.c.b16 %v513, %v497
        %v626 = vpack.c.b16 %v514, %v498
        %v627 = vpack.c.b16 %v515, %v499
        %v628 = vpack.c.b16 %v516, %v500
        %v629 = vpack.c.b16 %v533, %v517
        %v630 = vpack.c.b16 %v534, %v518
        %v631 = vpack.c.b16 %v535, %v519
        %v632 = vpack.c.b16 %v536, %v520
        %v633 = vpack.c.b16 %v537, %v521
        %v634 = vpack.c.b16 %v538, %v522
        %v635 = vpack.c.b16 %v539, %v523
        %v636 = vpack.c.b16 %v540, %v524
        %v637 = vpack.c.b16 %v541, %v525
        %v638 = vpack.c.b16 %v542, %v526
        %v639 = vpack.c.b16 %v543, %v527
        %v640 = vpack.c.b16 %v544, %v528
        %v641 = vpack.c.b16 %v545, %v529
        %v642 = vpack.c.b16 %v546, %v530
        %v643 = vpack.c.b16 %v547, %v531
        %v644 = vpack.c.b16 %v548, %v532
        %v645 = vpack.c.b16 %v565, %v549
        %v646 = vpack.c.b16 %v566, %v550
        %v647 = vpack.c.b16 %v567, %v551
        %v648 = vpack.c.b16 %v568, %v552
        %v649 = vpack.c.b16 %v569, %v553
        %v650 = vpack.c.b16 %v570, %v554
        %v651 = vpack.c.b16 %v571, %v555
        %v652 = vpack.c.b16 %v572, %v556
        %v653 = vpack.c.b16 %v573, %v557
        %v654 = vpack.c.b16 %v574, %v558
        %v655 = vpack.c.b16 %v575, %v559
        %v656 = vpack.c.b16 %v576, %v560
        %v657 = vpack.c.b16 %v577, %v561
        %v658 = vpack.c.b16 %v578, %v562
        %v659 = vpack.c.b16 %v579, %v563
        %v660 = vpack.c.b16 %v580, %v564
        %v661 = vpack.c.b16 %v597, %v581
        %v662 = vpack.c.b16 %v598, %v582
        %v663 = vpack.c.b16 %v599, %v583
        %v664 = vpack.c.b16 %v600, %v584
        %v665 = vpack.c.b16 %v601, %v585
        %v666 = vpack.c.b16 %v602, %v586
        %v667 = vpack.c.b16 %v603, %v587
        %v668 = vpack.c.b16 %v604, %v588
        %v669 = vpack.c.b16 %v605, %v589
        %v670 = vpack.c.b16 %v606, %v590
        %v671 = vpack.c.b16 %v607, %v591
        %v672 = vpack.c.b16 %v608, %v592
        %v673 = vpack.c.b16 %v609, %v593
        %v674 = vpack.c.b16 %v610, %v594
        %v675 = vpack.c.b16 %v611, %v595
        %v676 = vpack.c.b16 %v612, %v596
        %vm741 = vcmask 523264
        %v743 = vsel %vm741, %v356, 0
        %745 = vmatpush.bf16.msra.mxu0 0
        %746 = vmatpush.bf16.msra.mxu0 0
        %747 = vmatpush.bf16.msra.mxu0 0
        %748 = vmatpush.bf16.msra.mxu0 0
        %749 = vmatpush.bf16.msra.mxu0 %v661
        %750 = vmatpush.bf16.msra.mxu0 %v645
        %751 = vmatpush.bf16.msra.mxu0 %v629
        %752 = vmatpush.bf16.msra.mxu0 %v613
        %753 = vmatmul.bf16.gmra.mxu0 %v743
        %v754 = vpop.f32.mrf.mxu0
        %v755 = vadd.f32 0.0, %v754
        %v756 = vpop.f32.mrf.mxu0
        %757 = vdwg.mxu0
        %758 = vmatpush.bf16.msra.mxu0 0
        %759 = vmatpush.bf16.msra.mxu0 0
        %760 = vmatpush.bf16.msra.mxu0 0
        %761 = vmatpush.bf16.msra.mxu0 0
        %762 = vmatpush.bf16.msra.mxu0 %v662
        %763 = vmatpush.bf16.msra.mxu0 %v646
        %764 = vmatpush.bf16.msra.mxu0 %v630
        %765 = vmatpush.bf16.msra.mxu0 %v614
        %766 = vmatmul.bf16.gmra.mxu0 %v743
        %v767 = vpop.f32.mrf.mxu0
        %v768 = vadd.f32 0.0, %v767
        %v769 = vpop.f32.mrf.mxu0
        %770 = vdwg.mxu0
        %771 = vmatpush.bf16.msra.mxu0 0
        %772 = vmatpush.bf16.msra.mxu0 0
        %773 = vmatpush.bf16.msra.mxu0 0
        %774 = vmatpush.bf16.msra.mxu0 0
        %775 = vmatpush.bf16.msra.mxu0 %v663
        %776 = vmatpush.bf16.msra.mxu0 %v647
        %777 = vmatpush.bf16.msra.mxu0 %v631
        %778 = vmatpush.bf16.msra.mxu0 %v615
        %779 = vmatmul.bf16.gmra.mxu0 %v743
        %v780 = vpop.f32.mrf.mxu0
        %v781 = vadd.f32 0.0, %v780
        %v782 = vpop.f32.mrf.mxu0
        %783 = vdwg.mxu0
        %784 = vmatpush.bf16.msra.mxu0 0
        %785 = vmatpush.bf16.msra.mxu0 0
        %786 = vmatpush.bf16.msra.mxu0 0
        %787 = vmatpush.bf16.msra.mxu0 0
        %788 = vmatpush.bf16.msra.mxu0 %v664
        %789 = vmatpush.bf16.msra.mxu0 %v648
        %790 = vmatpush.bf16.msra.mxu0 %v632
        %791 = vmatpush.bf16.msra.mxu0 %v616
        %792 = vmatmul.bf16.gmra.mxu0 %v743
        %v793 = vpop.f32.mrf.mxu0
        %v794 = vadd.f32 0.0, %v793
        %v795 = vpop.f32.mrf.mxu0
        %796 = vdwg.mxu0
        %797 = vmatpush.bf16.msra.mxu0 0
        %798 = vmatpush.bf16.msra.mxu0 0
        %799 = vmatpush.bf16.msra.mxu0 0
        %800 = vmatpush.bf16.msra.mxu0 0
        %801 = vmatpush.bf16.msra.mxu0 %v665
        %802 = vmatpush.bf16.msra.mxu0 %v649
        %803 = vmatpush.bf16.msra.mxu0 %v633
        %804 = vmatpush.bf16.msra.mxu0 %v617
        %805 = vmatmul.bf16.gmra.mxu0 %v743
        %v806 = vpop.f32.mrf.mxu0
        %v807 = vadd.f32 0.0, %v806
        %v808 = vpop.f32.mrf.mxu0
        %809 = vdwg.mxu0
        %810 = vmatpush.bf16.msra.mxu0 0
        %811 = vmatpush.bf16.msra.mxu0 0
        %812 = vmatpush.bf16.msra.mxu0 0
        %813 = vmatpush.bf16.msra.mxu0 0
        %814 = vmatpush.bf16.msra.mxu0 %v666
        %815 = vmatpush.bf16.msra.mxu0 %v650
        %816 = vmatpush.bf16.msra.mxu0 %v634
        %817 = vmatpush.bf16.msra.mxu0 %v618
        %818 = vmatmul.bf16.gmra.mxu0 %v743
        %v819 = vpop.f32.mrf.mxu0
        %v820 = vadd.f32 0.0, %v819
        %v821 = vpop.f32.mrf.mxu0
        %822 = vdwg.mxu0
        %823 = vmatpush.bf16.msra.mxu0 0
        %824 = vmatpush.bf16.msra.mxu0 0
        %825 = vmatpush.bf16.msra.mxu0 0
        %826 = vmatpush.bf16.msra.mxu0 0
        %827 = vmatpush.bf16.msra.mxu0 %v667
        %828 = vmatpush.bf16.msra.mxu0 %v651
        %829 = vmatpush.bf16.msra.mxu0 %v635
        %830 = vmatpush.bf16.msra.mxu0 %v619
        %831 = vmatmul.bf16.gmra.mxu0 %v743
        %v832 = vpop.f32.mrf.mxu0
        %v833 = vadd.f32 0.0, %v832
        %v834 = vpop.f32.mrf.mxu0
        %835 = vdwg.mxu0
        %836 = vmatpush.bf16.msra.mxu0 0
        %837 = vmatpush.bf16.msra.mxu0 0
        %838 = vmatpush.bf16.msra.mxu0 0
        %839 = vmatpush.bf16.msra.mxu0 0
        %840 = vmatpush.bf16.msra.mxu0 %v668
        %841 = vmatpush.bf16.msra.mxu0 %v652
        %842 = vmatpush.bf16.msra.mxu0 %v636
        %843 = vmatpush.bf16.msra.mxu0 %v620
        %844 = vmatmul.bf16.gmra.mxu0 %v743
        %v845 = vpop.f32.mrf.mxu0
        %v846 = vadd.f32 0.0, %v845
        %v847 = vpop.f32.mrf.mxu0
        %848 = vdwg.mxu0
        %849 = vmatpush.bf16.msra.mxu0 0
        %850 = vmatpush.bf16.msra.mxu0 0
        %851 = vmatpush.bf16.msra.mxu0 0
        %852 = vmatpush.bf16.msra.mxu0 0
        %853 = vmatpush.bf16.msra.mxu0 %v669
        %854 = vmatpush.bf16.msra.mxu0 %v653
        %855 = vmatpush.bf16.msra.mxu0 %v637
        %856 = vmatpush.bf16.msra.mxu0 %v621
        %857 = vmatmul.bf16.gmra.mxu0 %v743
        %v858 = vpop.f32.mrf.mxu0
        %v859 = vadd.f32 0.0, %v858
        %v860 = vpop.f32.mrf.mxu0
        %861 = vdwg.mxu0
        %862 = vmatpush.bf16.msra.mxu0 0
        %863 = vmatpush.bf16.msra.mxu0 0
        %864 = vmatpush.bf16.msra.mxu0 0
        %865 = vmatpush.bf16.msra.mxu0 0
        %866 = vmatpush.bf16.msra.mxu0 %v670
        %867 = vmatpush.bf16.msra.mxu0 %v654
        %868 = vmatpush.bf16.msra.mxu0 %v638
        %869 = vmatpush.bf16.msra.mxu0 %v622
        %870 = vmatmul.bf16.gmra.mxu0 %v743
        %v871 = vpop.f32.mrf.mxu0
        %v872 = vadd.f32 0.0, %v871
        %v873 = vpop.f32.mrf.mxu0
        %874 = vdwg.mxu0
        %875 = vmatpush.bf16.msra.mxu0 0
        %876 = vmatpush.bf16.msra.mxu0 0
        %877 = vmatpush.bf16.msra.mxu0 0
        %878 = vmatpush.bf16.msra.mxu0 0
        %879 = vmatpush.bf16.msra.mxu0 %v671
        %880 = vmatpush.bf16.msra.mxu0 %v655
        %881 = vmatpush.bf16.msra.mxu0 %v639
        %882 = vmatpush.bf16.msra.mxu0 %v623
        %883 = vmatmul.bf16.gmra.mxu0 %v743
        %v884 = vpop.f32.mrf.mxu0
        %v885 = vadd.f32 0.0, %v884
        %v886 = vpop.f32.mrf.mxu0
        %887 = vdwg.mxu0
        %888 = vmatpush.bf16.msra.mxu0 0
        %889 = vmatpush.bf16.msra.mxu0 0
        %890 = vmatpush.bf16.msra.mxu0 0
        %891 = vmatpush.bf16.msra.mxu0 0
        %892 = vmatpush.bf16.msra.mxu0 %v672
        %893 = vmatpush.bf16.msra.mxu0 %v656
        %894 = vmatpush.bf16.msra.mxu0 %v640
        %895 = vmatpush.bf16.msra.mxu0 %v624
        %896 = vmatmul.bf16.gmra.mxu0 %v743
        %v897 = vpop.f32.mrf.mxu0
        %v898 = vadd.f32 0.0, %v897
        %v899 = vpop.f32.mrf.mxu0
        %900 = vdwg.mxu0
        %901 = vmatpush.bf16.msra.mxu0 0
        %902 = vmatpush.bf16.msra.mxu0 0
        %903 = vmatpush.bf16.msra.mxu0 0
        %904 = vmatpush.bf16.msra.mxu0 0
        %905 = vmatpush.bf16.msra.mxu0 %v673
        %906 = vmatpush.bf16.msra.mxu0 %v657
        %907 = vmatpush.bf16.msra.mxu0 %v641
        %908 = vmatpush.bf16.msra.mxu0 %v625
        %909 = vmatmul.bf16.gmra.mxu0 %v743
        %v910 = vpop.f32.mrf.mxu0
        %v911 = vadd.f32 0.0, %v910
        %v912 = vpop.f32.mrf.mxu0
        %913 = vdwg.mxu0
        %914 = vmatpush.bf16.msra.mxu0 0
        %915 = vmatpush.bf16.msra.mxu0 0
        %916 = vmatpush.bf16.msra.mxu0 0
        %917 = vmatpush.bf16.msra.mxu0 0
        %918 = vmatpush.bf16.msra.mxu0 %v674
        %919 = vmatpush.bf16.msra.mxu0 %v658
        %920 = vmatpush.bf16.msra.mxu0 %v642
        %921 = vmatpush.bf16.msra.mxu0 %v626
        %922 = vmatmul.bf16.gmra.mxu0 %v743
        %v923 = vpop.f32.mrf.mxu0
        %v924 = vadd.f32 0.0, %v923
        %v925 = vpop.f32.mrf.mxu0
        %926 = vdwg.mxu0
        %927 = vmatpush.bf16.msra.mxu0 0
        %928 = vmatpush.bf16.msra.mxu0 0
        %929 = vmatpush.bf16.msra.mxu0 0
        %930 = vmatpush.bf16.msra.mxu0 0
        %931 = vmatpush.bf16.msra.mxu0 %v675
        %932 = vmatpush.bf16.msra.mxu0 %v659
        %933 = vmatpush.bf16.msra.mxu0 %v643
        %934 = vmatpush.bf16.msra.mxu0 %v627
        %935 = vmatmul.bf16.gmra.mxu0 %v743
        %v936 = vpop.f32.mrf.mxu0
        %v937 = vadd.f32 0.0, %v936
        %v938 = vpop.f32.mrf.mxu0
        %939 = vdwg.mxu0
        %940 = vmatpush.bf16.msra.mxu0 0
        %941 = vmatpush.bf16.msra.mxu0 0
        %942 = vmatpush.bf16.msra.mxu0 0
        %943 = vmatpush.bf16.msra.mxu0 0
        %944 = vmatpush.bf16.msra.mxu0 %v676
        %945 = vmatpush.bf16.msra.mxu0 %v660
        %946 = vmatpush.bf16.msra.mxu0 %v644
        %947 = vmatpush.bf16.msra.mxu0 %v628
        %948 = vmatmul.bf16.gmra.mxu0 %v743
        %v949 = vpop.f32.mrf.mxu0
        %v950 = vadd.f32 0.0, %v949
        %v951 = vpop.f32.mrf.mxu0
        %952 = vdwg.mxu0
        %v953 = vrot.slane %v755, 4
        %v954 = vadd.f32 %v755, %v953
        %v955 = vrot.slane %v954, 2
        %v956 = vadd.f32 %v954, %v955
        %v957 = vrot.slane %v956, 1
        %v958 = vadd.f32 %v956, %v957
        %v959 = vrot.slane %v768, 4
        %v960 = vadd.f32 %v768, %v959
        %v961 = vrot.slane %v960, 2
        %v962 = vadd.f32 %v960, %v961
        %v963 = vrot.slane %v962, 1
        %v964 = vadd.f32 %v962, %v963
        %v965 = vrot.slane %v781, 4
        %v966 = vadd.f32 %v781, %v965
        %v967 = vrot.slane %v966, 2
        %v968 = vadd.f32 %v966, %v967
        %v969 = vrot.slane %v968, 1
        %v970 = vadd.f32 %v968, %v969
        %v971 = vrot.slane %v794, 4
        %v972 = vadd.f32 %v794, %v971
        %v973 = vrot.slane %v972, 2
        %v974 = vadd.f32 %v972, %v973
        %v975 = vrot.slane %v974, 1
        %v976 = vadd.f32 %v974, %v975
        %v977 = vrot.slane %v807, 4
        %v978 = vadd.f32 %v807, %v977
        %v979 = vrot.slane %v978, 2
        %v980 = vadd.f32 %v978, %v979
        %v981 = vrot.slane %v980, 1
        %v982 = vadd.f32 %v980, %v981
        %v983 = vrot.slane %v820, 4
        %v984 = vadd.f32 %v820, %v983
        %v985 = vrot.slane %v984, 2
        %v986 = vadd.f32 %v984, %v985
        %v987 = vrot.slane %v986, 1
        %v988 = vadd.f32 %v986, %v987
        %v989 = vrot.slane %v833, 4
        %v990 = vadd.f32 %v833, %v989
        %v991 = vrot.slane %v990, 2
        %v992 = vadd.f32 %v990, %v991
        %v993 = vrot.slane %v992, 1
        %v994 = vadd.f32 %v992, %v993
        %v995 = vrot.slane %v846, 4
        %v996 = vadd.f32 %v846, %v995
        %v997 = vrot.slane %v996, 2
        %v998 = vadd.f32 %v996, %v997
        %v999 = vrot.slane %v998, 1
        %v1000 = vadd.f32 %v998, %v999
        %v1001 = vrot.slane %v859, 4
        %v1002 = vadd.f32 %v859, %v1001
        %v1003 = vrot.slane %v1002, 2
        %v1004 = vadd.f32 %v1002, %v1003
        %v1005 = vrot.slane %v1004, 1
        %v1006 = vadd.f32 %v1004, %v1005
        %v1007 = vrot.slane %v872, 4
        %v1008 = vadd.f32 %v872, %v1007
        %v1009 = vrot.slane %v1008, 2
        %v1010 = vadd.f32 %v1008, %v1009
        %v1011 = vrot.slane %v1010, 1
        %v1012 = vadd.f32 %v1010, %v1011
        %v1013 = vrot.slane %v885, 4
        %v1014 = vadd.f32 %v885, %v1013
        %v1015 = vrot.slane %v1014, 2
        %v1016 = vadd.f32 %v1014, %v1015
        %v1017 = vrot.slane %v1016, 1
        %v1018 = vadd.f32 %v1016, %v1017
        %v1019 = vrot.slane %v898, 4
        %v1020 = vadd.f32 %v898, %v1019
        %v1021 = vrot.slane %v1020, 2
        %v1022 = vadd.f32 %v1020, %v1021
        %v1023 = vrot.slane %v1022, 1
        %v1024 = vadd.f32 %v1022, %v1023
        %v1025 = vrot.slane %v911, 4
        %v1026 = vadd.f32 %v911, %v1025
        %v1027 = vrot.slane %v1026, 2
        %v1028 = vadd.f32 %v1026, %v1027
        %v1029 = vrot.slane %v1028, 1
        %v1030 = vadd.f32 %v1028, %v1029
        %v1031 = vrot.slane %v924, 4
        %v1032 = vadd.f32 %v924, %v1031
        %v1033 = vrot.slane %v1032, 2
        %v1034 = vadd.f32 %v1032, %v1033
        %v1035 = vrot.slane %v1034, 1
        %v1036 = vadd.f32 %v1034, %v1035
        %v1037 = vrot.slane %v937, 4
        %v1038 = vadd.f32 %v937, %v1037
        %v1039 = vrot.slane %v1038, 2
        %v1040 = vadd.f32 %v1038, %v1039
        %v1041 = vrot.slane %v1040, 1
        %v1042 = vadd.f32 %v1040, %v1041
        %v1043 = vrot.slane %v950, 4
        %v1044 = vadd.f32 %v950, %v1043
        %v1045 = vrot.slane %v1044, 2
        %v1046 = vadd.f32 %v1044, %v1045
        %v1047 = vrot.slane %v1046, 1
        %v1048 = vadd.f32 %v1046, %v1047
        %v1049 = vrcp.pop 8.0
        %v1050 = vmul.f32 8.0, %v1049
        %v1051 = vsub.f32 1.0, %v1050
        %v1052 = vmul.f32 %v1049, %v1051
        %v1053 = vadd.f32 %v1049, %v1052
        %vm1054 = vweird.f32 %v1049
        %v1055 = vsel %vm1054, %v1049, %v1053
        %v1056 = vmul.f32 %v958, %v1055
        %v1057 = vmul.f32 %v964, %v1055
        %v1058 = vmul.f32 %v970, %v1055
        %v1059 = vmul.f32 %v976, %v1055
        %v1060 = vmul.f32 %v982, %v1055
        %v1061 = vmul.f32 %v988, %v1055
        %v1062 = vmul.f32 %v994, %v1055
        %v1063 = vmul.f32 %v1000, %v1055
        %v1064 = vmul.f32 %v1006, %v1055
        %v1065 = vmul.f32 %v1012, %v1055
        %v1066 = vmul.f32 %v1018, %v1055
        %v1067 = vmul.f32 %v1024, %v1055
        %v1068 = vmul.f32 %v1030, %v1055
        %v1069 = vmul.f32 %v1036, %v1055
        %v1070 = vmul.f32 %v1042, %v1055
        %v1071 = vmul.f32 %v1048, %v1055
        %v1072 = vsub.f32 %v755, %v1056
        %v1073 = vsub.f32 %v768, %v1057
        %v1074 = vsub.f32 %v781, %v1058
        %v1075 = vsub.f32 %v794, %v1059
        %v1076 = vsub.f32 %v807, %v1060
        %v1077 = vsub.f32 %v820, %v1061
        %v1078 = vsub.f32 %v833, %v1062
        %v1079 = vsub.f32 %v846, %v1063
        %v1080 = vsub.f32 %v859, %v1064
        %v1081 = vsub.f32 %v872, %v1065
        %v1082 = vsub.f32 %v885, %v1066
        %v1083 = vsub.f32 %v898, %v1067
        %v1084 = vsub.f32 %v911, %v1068
        %v1085 = vsub.f32 %v924, %v1069
        %v1086 = vsub.f32 %v937, %v1070
        %v1087 = vsub.f32 %v950, %v1071
        %v1088 = vmul.f32 %v1072, %v1072
        %v1089 = vmul.f32 %v1073, %v1073
        %v1090 = vmul.f32 %v1074, %v1074
        %v1091 = vmul.f32 %v1075, %v1075
        %v1092 = vmul.f32 %v1076, %v1076
        %v1093 = vmul.f32 %v1077, %v1077
        %v1094 = vmul.f32 %v1078, %v1078
        %v1095 = vmul.f32 %v1079, %v1079
        %v1096 = vmul.f32 %v1080, %v1080
        %v1097 = vmul.f32 %v1081, %v1081
        %v1098 = vmul.f32 %v1082, %v1082
        %v1099 = vmul.f32 %v1083, %v1083
        %v1100 = vmul.f32 %v1084, %v1084
        %v1101 = vmul.f32 %v1085, %v1085
        %v1102 = vmul.f32 %v1086, %v1086
        %v1103 = vmul.f32 %v1087, %v1087
        %v1104 = vrot.slane %v1088, 4
        %v1105 = vadd.f32 %v1088, %v1104
        %v1106 = vrot.slane %v1105, 2
        %v1107 = vadd.f32 %v1105, %v1106
        %v1108 = vrot.slane %v1107, 1
        %v1109 = vadd.f32 %v1107, %v1108
        %v1110 = vrot.slane %v1089, 4
        %v1111 = vadd.f32 %v1089, %v1110
        %v1112 = vrot.slane %v1111, 2
        %v1113 = vadd.f32 %v1111, %v1112
        %v1114 = vrot.slane %v1113, 1
        %v1115 = vadd.f32 %v1113, %v1114
        %v1116 = vrot.slane %v1090, 4
        %v1117 = vadd.f32 %v1090, %v1116
        %v1118 = vrot.slane %v1117, 2
        %v1119 = vadd.f32 %v1117, %v1118
        %v1120 = vrot.slane %v1119, 1
        %v1121 = vadd.f32 %v1119, %v1120
        %v1122 = vrot.slane %v1091, 4
        %v1123 = vadd.f32 %v1091, %v1122
        %v1124 = vrot.slane %v1123, 2
        %v1125 = vadd.f32 %v1123, %v1124
        %v1126 = vrot.slane %v1125, 1
        %v1127 = vadd.f32 %v1125, %v1126
        %v1128 = vrot.slane %v1092, 4
        %v1129 = vadd.f32 %v1092, %v1128
        %v1130 = vrot.slane %v1129, 2
        %v1131 = vadd.f32 %v1129, %v1130
        %v1132 = vrot.slane %v1131, 1
        %v1133 = vadd.f32 %v1131, %v1132
        %v1134 = vrot.slane %v1093, 4
        %v1135 = vadd.f32 %v1093, %v1134
        %v1136 = vrot.slane %v1135, 2
        %v1137 = vadd.f32 %v1135, %v1136
        %v1138 = vrot.slane %v1137, 1
        %v1139 = vadd.f32 %v1137, %v1138
        %v1140 = vrot.slane %v1094, 4
        %v1141 = vadd.f32 %v1094, %v1140
        %v1142 = vrot.slane %v1141, 2
        %v1143 = vadd.f32 %v1141, %v1142
        %v1144 = vrot.slane %v1143, 1
        %v1145 = vadd.f32 %v1143, %v1144
        %v1146 = vrot.slane %v1095, 4
        %v1147 = vadd.f32 %v1095, %v1146
        %v1148 = vrot.slane %v1147, 2
        %v1149 = vadd.f32 %v1147, %v1148
        %v1150 = vrot.slane %v1149, 1
        %v1151 = vadd.f32 %v1149, %v1150
        %v1152 = vrot.slane %v1096, 4
        %v1153 = vadd.f32 %v1096, %v1152
        %v1154 = vrot.slane %v1153, 2
        %v1155 = vadd.f32 %v1153, %v1154
        %v1156 = vrot.slane %v1155, 1
        %v1157 = vadd.f32 %v1155, %v1156
        %v1158 = vrot.slane %v1097, 4
        %v1159 = vadd.f32 %v1097, %v1158
        %v1160 = vrot.slane %v1159, 2
        %v1161 = vadd.f32 %v1159, %v1160
        %v1162 = vrot.slane %v1161, 1
        %v1163 = vadd.f32 %v1161, %v1162
        %v1164 = vrot.slane %v1098, 4
        %v1165 = vadd.f32 %v1098, %v1164
        %v1166 = vrot.slane %v1165, 2
        %v1167 = vadd.f32 %v1165, %v1166
        %v1168 = vrot.slane %v1167, 1
        %v1169 = vadd.f32 %v1167, %v1168
        %v1170 = vrot.slane %v1099, 4
        %v1171 = vadd.f32 %v1099, %v1170
        %v1172 = vrot.slane %v1171, 2
        %v1173 = vadd.f32 %v1171, %v1172
        %v1174 = vrot.slane %v1173, 1
        %v1175 = vadd.f32 %v1173, %v1174
        %v1176 = vrot.slane %v1100, 4
        %v1177 = vadd.f32 %v1100, %v1176
        %v1178 = vrot.slane %v1177, 2
        %v1179 = vadd.f32 %v1177, %v1178
        %v1180 = vrot.slane %v1179, 1
        %v1181 = vadd.f32 %v1179, %v1180
        %v1182 = vrot.slane %v1101, 4
        %v1183 = vadd.f32 %v1101, %v1182
        %v1184 = vrot.slane %v1183, 2
        %v1185 = vadd.f32 %v1183, %v1184
        %v1186 = vrot.slane %v1185, 1
        %v1187 = vadd.f32 %v1185, %v1186
        %v1188 = vrot.slane %v1102, 4
        %v1189 = vadd.f32 %v1102, %v1188
        %v1190 = vrot.slane %v1189, 2
        %v1191 = vadd.f32 %v1189, %v1190
        %v1192 = vrot.slane %v1191, 1
        %v1193 = vadd.f32 %v1191, %v1192
        %v1194 = vrot.slane %v1103, 4
        %v1195 = vadd.f32 %v1103, %v1194
        %v1196 = vrot.slane %v1195, 2
        %v1197 = vadd.f32 %v1195, %v1196
        %v1198 = vrot.slane %v1197, 1
        %v1199 = vadd.f32 %v1197, %v1198
        %v1200 = vmul.f32 %v1109, %v1055
        %v1201 = vmul.f32 %v1115, %v1055
        %v1202 = vmul.f32 %v1121, %v1055
        %v1203 = vmul.f32 %v1127, %v1055
        %v1204 = vmul.f32 %v1133, %v1055
        %v1205 = vmul.f32 %v1139, %v1055
        %v1206 = vmul.f32 %v1145, %v1055
        %v1207 = vmul.f32 %v1151, %v1055
        %v1208 = vmul.f32 %v1157, %v1055
        %v1209 = vmul.f32 %v1163, %v1055
        %v1210 = vmul.f32 %v1169, %v1055
        %v1211 = vmul.f32 %v1175, %v1055
        %v1212 = vmul.f32 %v1181, %v1055
        %v1213 = vmul.f32 %v1187, %v1055
        %v1214 = vmul.f32 %v1193, %v1055
        %v1215 = vmul.f32 %v1199, %v1055
        %v1216 = vld [vmem:[%s290] ss:$2 sm:$0xff]
        %s1217 = scalar_lea.vmem %s290, 16 [#allocation4]
        %v1218 = vld [vmem:[%s1217] ss:$2 sm:$0xff]
        %s1219 = scalar_lea.vmem %s290, 1 [#allocation4]
        %v1220 = vld [vmem:[%s1219] ss:$2 sm:$0xff]
        %s1221 = scalar_lea.vmem %s290, 17 [#allocation4]
        %v1222 = vld [vmem:[%s1221] ss:$2 sm:$0xff]
        %v1223 = vadd.f32 %v1200, 1e-05
        %v1224 = vadd.f32 %v1201, 1e-05
        %v1225 = vadd.f32 %v1202, 1e-05
        %v1226 = vadd.f32 %v1203, 1e-05
        %v1227 = vadd.f32 %v1204, 1e-05
        %v1228 = vadd.f32 %v1205, 1e-05
        %v1229 = vadd.f32 %v1206, 1e-05
        %v1230 = vadd.f32 %v1207, 1e-05
        %v1231 = vadd.f32 %v1208, 1e-05
        %v1232 = vadd.f32 %v1209, 1e-05
        %v1233 = vadd.f32 %v1210, 1e-05
        %v1234 = vadd.f32 %v1211, 1e-05
        %v1235 = vadd.f32 %v1212, 1e-05
        %v1236 = vadd.f32 %v1213, 1e-05
        %v1237 = vadd.f32 %v1214, 1e-05
        %v1238 = vadd.f32 %v1215, 1e-05
        %v1239 = vrsqrt.pop %v1223
        %v1240 = vmul.f32 %v1239, %v1223
        %v1241 = vmul.f32 %v1240, %v1239
        %v1242 = vmul.f32 0.5, %v1241
        %v1243 = vsub.f32 1.5, %v1242
        %v1244 = vmul.f32 %v1239, %v1243
        %vm1245 = vweird.f32 %v1223
        %vm1246 = vweird.f32 %v1239
        %vm1247 = vmor %vm1245, %vm1246
        %v1248 = vsel %vm1247, %v1239, %v1244
        %v1249 = vrsqrt.pop %v1224
        %v1250 = vmul.f32 %v1249, %v1224
        %v1251 = vmul.f32 %v1250, %v1249
        %v1252 = vmul.f32 0.5, %v1251
        %v1253 = vsub.f32 1.5, %v1252
        %v1254 = vmul.f32 %v1249, %v1253
        %vm1255 = vweird.f32 %v1224
        %vm1256 = vweird.f32 %v1249
        %vm1257 = vmor %vm1255, %vm1256
        %v1258 = vsel %vm1257, %v1249, %v1254
        %v1259 = vrsqrt.pop %v1225
        %v1260 = vmul.f32 %v1259, %v1225
        %v1261 = vmul.f32 %v1260, %v1259
        %v1262 = vmul.f32 0.5, %v1261
        %v1263 = vsub.f32 1.5, %v1262
        %v1264 = vmul.f32 %v1259, %v1263
        %vm1265 = vweird.f32 %v1225
        %vm1266 = vweird.f32 %v1259
        %vm1267 = vmor %vm1265, %vm1266
        %v1268 = vsel %vm1267, %v1259, %v1264
        %v1269 = vrsqrt.pop %v1226
        %v1270 = vmul.f32 %v1269, %v1226
        %v1271 = vmul.f32 %v1270, %v1269
        %v1272 = vmul.f32 0.5, %v1271
        %v1273 = vsub.f32 1.5, %v1272
        %v1274 = vmul.f32 %v1269, %v1273
        %vm1275 = vweird.f32 %v1226
        %vm1276 = vweird.f32 %v1269
        %vm1277 = vmor %vm1275, %vm1276
        %v1278 = vsel %vm1277, %v1269, %v1274
        %v1279 = vrsqrt.pop %v1227
        %v1280 = vmul.f32 %v1279, %v1227
        %v1281 = vmul.f32 %v1280, %v1279
        %v1282 = vmul.f32 0.5, %v1281
        %v1283 = vsub.f32 1.5, %v1282
        %v1284 = vmul.f32 %v1279, %v1283
        %vm1285 = vweird.f32 %v1227
        %vm1286 = vweird.f32 %v1279
        %vm1287 = vmor %vm1285, %vm1286
        %v1288 = vsel %vm1287, %v1279, %v1284
        %v1289 = vrsqrt.pop %v1228
        %v1290 = vmul.f32 %v1289, %v1228
        %v1291 = vmul.f32 %v1290, %v1289
        %v1292 = vmul.f32 0.5, %v1291
        %v1293 = vsub.f32 1.5, %v1292
        %v1294 = vmul.f32 %v1289, %v1293
        %vm1295 = vweird.f32 %v1228
        %vm1296 = vweird.f32 %v1289
        %vm1297 = vmor %vm1295, %vm1296
        %v1298 = vsel %vm1297, %v1289, %v1294
        %v1299 = vrsqrt.pop %v1229
        %v1300 = vmul.f32 %v1299, %v1229
        %v1301 = vmul.f32 %v1300, %v1299
        %v1302 = vmul.f32 0.5, %v1301
        %v1303 = vsub.f32 1.5, %v1302
        %v1304 = vmul.f32 %v1299, %v1303
        %vm1305 = vweird.f32 %v1229
        %vm1306 = vweird.f32 %v1299
        %vm1307 = vmor %vm1305, %vm1306
        %v1308 = vsel %vm1307, %v1299, %v1304
        %v1309 = vrsqrt.pop %v1230
        %v1310 = vmul.f32 %v1309, %v1230
        %v1311 = vmul.f32 %v1310, %v1309
        %v1312 = vmul.f32 0.5, %v1311
        %v1313 = vsub.f32 1.5, %v1312
        %v1314 = vmul.f32 %v1309, %v1313
        %vm1315 = vweird.f32 %v1230
        %vm1316 = vweird.f32 %v1309
        %vm1317 = vmor %vm1315, %vm1316
        %v1318 = vsel %vm1317, %v1309, %v1314
        %v1319 = vrsqrt.pop %v1231
        %v1320 = vmul.f32 %v1319, %v1231
        %v1321 = vmul.f32 %v1320, %v1319
        %v1322 = vmul.f32 0.5, %v1321
        %v1323 = vsub.f32 1.5, %v1322
        %v1324 = vmul.f32 %v1319, %v1323
        %vm1325 = vweird.f32 %v1231
        %vm1326 = vweird.f32 %v1319
        %vm1327 = vmor %vm1325, %vm1326
        %v1328 = vsel %vm1327, %v1319, %v1324
        %v1329 = vrsqrt.pop %v1232
        %v1330 = vmul.f32 %v1329, %v1232
        %v1331 = vmul.f32 %v1330, %v1329
        %v1332 = vmul.f32 0.5, %v1331
        %v1333 = vsub.f32 1.5, %v1332
        %v1334 = vmul.f32 %v1329, %v1333
        %vm1335 = vweird.f32 %v1232
        %vm1336 = vweird.f32 %v1329
        %vm1337 = vmor %vm1335, %vm1336
        %v1338 = vsel %vm1337, %v1329, %v1334
        %v1339 = vrsqrt.pop %v1233
        %v1340 = vmul.f32 %v1339, %v1233
        %v1341 = vmul.f32 %v1340, %v1339
        %v1342 = vmul.f32 0.5, %v1341
        %v1343 = vsub.f32 1.5, %v1342
        %v1344 = vmul.f32 %v1339, %v1343
        %vm1345 = vweird.f32 %v1233
        %vm1346 = vweird.f32 %v1339
        %vm1347 = vmor %vm1345, %vm1346
        %v1348 = vsel %vm1347, %v1339, %v1344
        %v1349 = vrsqrt.pop %v1234
        %v1350 = vmul.f32 %v1349, %v1234
        %v1351 = vmul.f32 %v1350, %v1349
        %v1352 = vmul.f32 0.5, %v1351
        %v1353 = vsub.f32 1.5, %v1352
        %v1354 = vmul.f32 %v1349, %v1353
        %vm1355 = vweird.f32 %v1234
        %vm1356 = vweird.f32 %v1349
        %vm1357 = vmor %vm1355, %vm1356
        %v1358 = vsel %vm1357, %v1349, %v1354
        %v1359 = vrsqrt.pop %v1235
        %v1360 = vmul.f32 %v1359, %v1235
        %v1361 = vmul.f32 %v1360, %v1359
        %v1362 = vmul.f32 0.5, %v1361
        %v1363 = vsub.f32 1.5, %v1362
        %v1364 = vmul.f32 %v1359, %v1363
        %vm1365 = vweird.f32 %v1235
        %vm1366 = vweird.f32 %v1359
        %vm1367 = vmor %vm1365, %vm1366
        %v1368 = vsel %vm1367, %v1359, %v1364
        %v1369 = vrsqrt.pop %v1236
        %v1370 = vmul.f32 %v1369, %v1236
        %v1371 = vmul.f32 %v1370, %v1369
        %v1372 = vmul.f32 0.5, %v1371
        %v1373 = vsub.f32 1.5, %v1372
        %v1374 = vmul.f32 %v1369, %v1373
        %vm1375 = vweird.f32 %v1236
        %vm1376 = vweird.f32 %v1369
        %vm1377 = vmor %vm1375, %vm1376
        %v1378 = vsel %vm1377, %v1369, %v1374
        %v1379 = vrsqrt.pop %v1237
        %v1380 = vmul.f32 %v1379, %v1237
        %v1381 = vmul.f32 %v1380, %v1379
        %v1382 = vmul.f32 0.5, %v1381
        %v1383 = vsub.f32 1.5, %v1382
        %v1384 = vmul.f32 %v1379, %v1383
        %vm1385 = vweird.f32 %v1237
        %vm1386 = vweird.f32 %v1379
        %vm1387 = vmor %vm1385, %vm1386
        %v1388 = vsel %vm1387, %v1379, %v1384
        %v1389 = vrsqrt.pop %v1238
        %v1390 = vmul.f32 %v1389, %v1238
        %v1391 = vmul.f32 %v1390, %v1389
        %v1392 = vmul.f32 0.5, %v1391
        %v1393 = vsub.f32 1.5, %v1392
        %v1394 = vmul.f32 %v1389, %v1393
        %vm1395 = vweird.f32 %v1238
        %vm1396 = vweird.f32 %v1389
        %vm1397 = vmor %vm1395, %vm1396
        %v1398 = vsel %vm1397, %v1389, %v1394
        %v1415 = vrot.slane %v1258, 7
        %v1416 = vrot.slane %v1268, 6
        %v1417 = vrot.slane %v1278, 5
        %v1418 = vrot.slane %v1288, 4
        %v1419 = vrot.slane %v1298, 3
        %v1420 = vrot.slane %v1308, 2
        %v1421 = vrot.slane %v1318, 1
        %v1422 = vrot.slane %v1338, 7
        %v1423 = vrot.slane %v1348, 6
        %v1424 = vrot.slane %v1358, 5
        %v1425 = vrot.slane %v1368, 4
        %v1426 = vrot.slane %v1378, 3
        %v1427 = vrot.slane %v1388, 2
        %v1428 = vrot.slane %v1398, 1
        %vm1429 = vcmask 1040384
        %v1430 = vsel %vm1429, %v1248, %v1415
        %vm1431 = vcmask 1042434
        %v1432 = vsel %vm1431, %v1416, %v1417
        %vm1433 = vcmask 1041408
        %v1434 = vsel %vm1433, %v1430, %v1432
        %vm1435 = vcmask 1044484
        %v1436 = vsel %vm1435, %v1418, %v1419
        %vm1437 = vcmask 1046534
        %v1438 = vsel %vm1437, %v1420, %v1421
        %vm1439 = vcmask 1045508
        %v1440 = vsel %vm1439, %v1436, %v1438
        %vm1441 = vcmask 1043456
        %v1442 = vsel %vm1441, %v1434, %v1440
        %v1443 = vsel %vm1429, %v1328, %v1422
        %v1444 = vsel %vm1431, %v1423, %v1424
        %v1445 = vsel %vm1433, %v1443, %v1444
        %v1446 = vsel %vm1435, %v1425, %v1426
        %v1447 = vsel %vm1437, %v1427, %v1428
        %v1448 = vsel %vm1439, %v1446, %v1447
        %v1449 = vsel %vm1441, %v1445, %v1448
        %v1452 = vmul.f32 %v1216, %v1442
        %v1453 = vmul.f32 %v1218, %v1449
        %v1456 = vperm.slane %v1452, 0
        %v1457 = vperm.slane %v1452, 1
        %v1458 = vperm.slane %v1452, 2
        %v1459 = vperm.slane %v1452, 3
        %v1460 = vperm.slane %v1452, 4
        %v1461 = vperm.slane %v1452, 5
        %v1462 = vperm.slane %v1452, 6
        %v1463 = vperm.slane %v1452, 7
        %v1464 = vperm.slane %v1453, 0
        %v1465 = vperm.slane %v1453, 1
        %v1466 = vperm.slane %v1453, 2
        %v1467 = vperm.slane %v1453, 3
        %v1468 = vperm.slane %v1453, 4
        %v1469 = vperm.slane %v1453, 5
        %v1470 = vperm.slane %v1453, 6
        %v1471 = vperm.slane %v1453, 7
        %v1488 = vmul.f32 %v1072, %v1456
        %v1489 = vmul.f32 %v1073, %v1457
        %v1490 = vmul.f32 %v1074, %v1458
        %v1491 = vmul.f32 %v1075, %v1459
        %v1492 = vmul.f32 %v1076, %v1460
        %v1493 = vmul.f32 %v1077, %v1461
        %v1494 = vmul.f32 %v1078, %v1462
        %v1495 = vmul.f32 %v1079, %v1463
        %v1496 = vmul.f32 %v1080, %v1464
        %v1497 = vmul.f32 %v1081, %v1465
        %v1498 = vmul.f32 %v1082, %v1466
        %v1499 = vmul.f32 %v1083, %v1467
        %v1500 = vmul.f32 %v1084, %v1468
        %v1501 = vmul.f32 %v1085, %v1469
        %v1502 = vmul.f32 %v1086, %v1470
        %v1503 = vmul.f32 %v1087, %v1471
        %v1506 = vperm.slane %v1220, 0
        %v1507 = vperm.slane %v1220, 1
        %v1508 = vperm.slane %v1220, 2
        %v1509 = vperm.slane %v1220, 3
        %v1510 = vperm.slane %v1220, 4
        %v1511 = vperm.slane %v1220, 5
        %v1512 = vperm.slane %v1220, 6
        %v1513 = vperm.slane %v1220, 7
        %v1514 = vperm.slane %v1222, 0
        %v1515 = vperm.slane %v1222, 1
        %v1516 = vperm.slane %v1222, 2
        %v1517 = vperm.slane %v1222, 3
        %v1518 = vperm.slane %v1222, 4
        %v1519 = vperm.slane %v1222, 5
        %v1520 = vperm.slane %v1222, 6
        %v1521 = vperm.slane %v1222, 7
        %v1538 = vadd.f32 %v1488, %v1506
        %v1539 = vadd.f32 %v1489, %v1507
        %v1540 = vadd.f32 %v1490, %v1508
        %v1541 = vadd.f32 %v1491, %v1509
        %v1542 = vadd.f32 %v1492, %v1510
        %v1543 = vadd.f32 %v1493, %v1511
        %v1544 = vadd.f32 %v1494, %v1512
        %v1545 = vadd.f32 %v1495, %v1513
        %v1546 = vadd.f32 %v1496, %v1514
        %v1547 = vadd.f32 %v1497, %v1515
        %v1548 = vadd.f32 %v1498, %v1516
        %v1549 = vadd.f32 %v1499, %v1517
        %v1550 = vadd.f32 %v1500, %v1518
        %v1551 = vadd.f32 %v1501, %v1519
        %v1552 = vadd.f32 %v1502, %v1520
        %v1553 = vadd.f32 %v1503, %v1521
        %v1554 = vmax.f32 %v1538, 0.0
        %v1555 = vmax.f32 %v1539, 0.0
        %v1556 = vmax.f32 %v1540, 0.0
        %v1557 = vmax.f32 %v1541, 0.0
        %v1558 = vmax.f32 %v1542, 0.0
        %v1559 = vmax.f32 %v1543, 0.0
        %v1560 = vmax.f32 %v1544, 0.0
        %v1561 = vmax.f32 %v1545, 0.0
        %v1562 = vmax.f32 %v1546, 0.0
        %v1563 = vmax.f32 %v1547, 0.0
        %v1564 = vmax.f32 %v1548, 0.0
        %v1565 = vmax.f32 %v1549, 0.0
        %v1566 = vmax.f32 %v1550, 0.0
        %v1567 = vmax.f32 %v1551, 0.0
        %v1568 = vmax.f32 %v1552, 0.0
        %v1569 = vmax.f32 %v1553, 0.0
        %v1570 = vpack.c.bf16 %v1554, %v1554
        %v1571 = vpack.c.bf16 %v1555, %v1555
        %v1572 = vpack.c.bf16 %v1556, %v1556
        %v1573 = vpack.c.bf16 %v1557, %v1557
        %v1574 = vpack.c.bf16 %v1558, %v1558
        %v1575 = vpack.c.bf16 %v1559, %v1559
        %v1576 = vpack.c.bf16 %v1560, %v1560
        %v1577 = vpack.c.bf16 %v1561, %v1561
        %v1578 = vpack.c.bf16 %v1562, %v1562
        %v1579 = vpack.c.bf16 %v1563, %v1563
        %v1580 = vpack.c.bf16 %v1564, %v1564
        %v1581 = vpack.c.bf16 %v1565, %v1565
        %v1582 = vpack.c.bf16 %v1566, %v1566
        %v1583 = vpack.c.bf16 %v1567, %v1567
        %v1584 = vpack.c.bf16 %v1568, %v1568
        %v1585 = vpack.c.bf16 %v1569, %v1569
        %v1586 = vld [vmem:[%s300] sm:$0xf]
        %v1587 = vld [vmem:[%s300 + $0x4] sm:$0xf]
        %v1588 = vld [vmem:[%s300 + $0x8] sm:$0xf]
        %v1589 = vld [vmem:[%s300 + $0xc] sm:$0xf]
        %v1590 = vld [vmem:[%s300 + $0x10] sm:$0xf]
        %v1591 = vld [vmem:[%s300 + $0x14] sm:$0xf]
        %v1592 = vld [vmem:[%s300 + $0x18] sm:$0xf]
        %v1593 = vld [vmem:[%s300 + $0x1c] sm:$0xf]
        %v1594 = vld [vmem:[%s300 + $0x20] sm:$0xf]
        %v1595 = vld [vmem:[%s300 + $0x24] sm:$0xf]
        %v1596 = vld [vmem:[%s300 + $0x28] sm:$0xf]
        %v1597 = vld [vmem:[%s300 + $0x2c] sm:$0xf]
        %v1598 = vld [vmem:[%s300 + $0x30] sm:$0xf]
        %v1599 = vld [vmem:[%s300 + $0x34] sm:$0xf]
        %v1600 = vld [vmem:[%s300 + $0x38] sm:$0xf]
        %v1601 = vld [vmem:[%s300 + $0x3c] sm:$0xf]
        %v1602 = vld [vmem:[%s300 + $0x40] sm:$0xf]
        %v1603 = vld [vmem:[%s300 + $0x44] sm:$0xf]
        %v1604 = vld [vmem:[%s300 + $0x48] sm:$0xf]
        %v1605 = vld [vmem:[%s300 + $0x4c] sm:$0xf]
        %v1606 = vld [vmem:[%s300 + $0x50] sm:$0xf]
        %v1607 = vld [vmem:[%s300 + $0x54] sm:$0xf]
        %v1608 = vld [vmem:[%s300 + $0x58] sm:$0xf]
        %v1609 = vld [vmem:[%s300 + $0x5c] sm:$0xf]
        %v1610 = vld [vmem:[%s300 + $0x60] sm:$0xf]
        %v1611 = vld [vmem:[%s300 + $0x64] sm:$0xf]
        %v1612 = vld [vmem:[%s300 + $0x68] sm:$0xf]
        %v1613 = vld [vmem:[%s300 + $0x6c] sm:$0xf]
        %v1614 = vld [vmem:[%s300 + $0x70] sm:$0xf]
        %v1615 = vld [vmem:[%s300 + $0x74] sm:$0xf]
        %v1616 = vld [vmem:[%s300 + $0x78] sm:$0xf]
        %v1617 = vld [vmem:[%s300 + $0x7c] sm:$0xf]
        %v1618 = vld [vmem:[%s300 + $0x80] sm:$0xf]
        %v1619 = vld [vmem:[%s300 + $0x84] sm:$0xf]
        %v1620 = vld [vmem:[%s300 + $0x88] sm:$0xf]
        %v1621 = vld [vmem:[%s300 + $0x8c] sm:$0xf]
        %v1622 = vld [vmem:[%s300 + $0x90] sm:$0xf]
        %v1623 = vld [vmem:[%s300 + $0x94] sm:$0xf]
        %v1624 = vld [vmem:[%s300 + $0x98] sm:$0xf]
        %v1625 = vld [vmem:[%s300 + $0x9c] sm:$0xf]
        %v1626 = vld [vmem:[%s300 + $0xa0] sm:$0xf]
        %v1627 = vld [vmem:[%s300 + $0xa4] sm:$0xf]
        %v1628 = vld [vmem:[%s300 + $0xa8] sm:$0xf]
        %v1629 = vld [vmem:[%s300 + $0xac] sm:$0xf]
        %v1630 = vld [vmem:[%s300 + $0xb0] sm:$0xf]
        %v1631 = vld [vmem:[%s300 + $0xb4] sm:$0xf]
        %v1632 = vld [vmem:[%s300 + $0xb8] sm:$0xf]
        %v1633 = vld [vmem:[%s300 + $0xbc] sm:$0xf]
        %v1634 = vld [vmem:[%s300 + $0xc0] sm:$0xf]
        %v1635 = vld [vmem:[%s300 + $0xc4] sm:$0xf]
        %v1636 = vld [vmem:[%s300 + $0xc8] sm:$0xf]
        %v1637 = vld [vmem:[%s300 + $0xcc] sm:$0xf]
        %v1638 = vld [vmem:[%s300 + $0xd0] sm:$0xf]
        %v1639 = vld [vmem:[%s300 + $0xd4] sm:$0xf]
        %v1640 = vld [vmem:[%s300 + $0xd8] sm:$0xf]
        %v1641 = vld [vmem:[%s300 + $0xdc] sm:$0xf]
        %v1642 = vld [vmem:[%s300 + $0xe0] sm:$0xf]
        %v1643 = vld [vmem:[%s300 + $0xe4] sm:$0xf]
        %v1644 = vld [vmem:[%s300 + $0xe8] sm:$0xf]
        %v1645 = vld [vmem:[%s300 + $0xec] sm:$0xf]
        %v1646 = vld [vmem:[%s300 + $0xf0] sm:$0xf]
        %v1647 = vld [vmem:[%s300 + $0xf4] sm:$0xf]
        %v1648 = vld [vmem:[%s300 + $0xf8] sm:$0xf]
        %v1649 = vld [vmem:[%s300 + $0xfc] sm:$0xf]
        %v1650 = vld [vmem:[%s300 + $0x100] sm:$0xf]
        %v1651 = vld [vmem:[%s300 + $0x104] sm:$0xf]
        %v1652 = vld [vmem:[%s300 + $0x108] sm:$0xf]
        %v1653 = vld [vmem:[%s300 + $0x10c] sm:$0xf]
        %v1654 = vld [vmem:[%s300 + $0x110] sm:$0xf]
        %v1655 = vld [vmem:[%s300 + $0x114] sm:$0xf]
        %v1656 = vld [vmem:[%s300 + $0x118] sm:$0xf]
        %v1657 = vld [vmem:[%s300 + $0x11c] sm:$0xf]
        %v1658 = vld [vmem:[%s300 + $0x120] sm:$0xf]
        %v1659 = vld [vmem:[%s300 + $0x124] sm:$0xf]
        %v1660 = vld [vmem:[%s300 + $0x128] sm:$0xf]
        %v1661 = vld [vmem:[%s300 + $0x12c] sm:$0xf]
        %v1662 = vld [vmem:[%s300 + $0x130] sm:$0xf]
        %v1663 = vld [vmem:[%s300 + $0x134] sm:$0xf]
        %v1664 = vld [vmem:[%s300 + $0x138] sm:$0xf]
        %v1665 = vld [vmem:[%s300 + $0x13c] sm:$0xf]
        %v1666 = vld [vmem:[%s300 + $0x140] sm:$0xf]
        %v1667 = vld [vmem:[%s300 + $0x144] sm:$0xf]
        %v1668 = vld [vmem:[%s300 + $0x148] sm:$0xf]
        %v1669 = vld [vmem:[%s300 + $0x14c] sm:$0xf]
        %v1670 = vld [vmem:[%s300 + $0x150] sm:$0xf]
        %v1671 = vld [vmem:[%s300 + $0x154] sm:$0xf]
        %v1672 = vld [vmem:[%s300 + $0x158] sm:$0xf]
        %v1673 = vld [vmem:[%s300 + $0x15c] sm:$0xf]
        %v1674 = vld [vmem:[%s300 + $0x160] sm:$0xf]
        %v1675 = vld [vmem:[%s300 + $0x164] sm:$0xf]
        %v1676 = vld [vmem:[%s300 + $0x168] sm:$0xf]
        %v1677 = vld [vmem:[%s300 + $0x16c] sm:$0xf]
        %v1678 = vld [vmem:[%s300 + $0x170] sm:$0xf]
        %v1679 = vld [vmem:[%s300 + $0x174] sm:$0xf]
        %v1680 = vld [vmem:[%s300 + $0x178] sm:$0xf]
        %v1681 = vld [vmem:[%s300 + $0x17c] sm:$0xf]
        %v1682 = vld [vmem:[%s300 + $0x180] sm:$0xf]
        %v1683 = vld [vmem:[%s300 + $0x184] sm:$0xf]
        %v1684 = vld [vmem:[%s300 + $0x188] sm:$0xf]
        %v1685 = vld [vmem:[%s300 + $0x18c] sm:$0xf]
        %v1686 = vld [vmem:[%s300 + $0x190] sm:$0xf]
        %v1687 = vld [vmem:[%s300 + $0x194] sm:$0xf]
        %v1688 = vld [vmem:[%s300 + $0x198] sm:$0xf]
        %v1689 = vld [vmem:[%s300 + $0x19c] sm:$0xf]
        %v1690 = vld [vmem:[%s300 + $0x1a0] sm:$0xf]
        %v1691 = vld [vmem:[%s300 + $0x1a4] sm:$0xf]
        %v1692 = vld [vmem:[%s300 + $0x1a8] sm:$0xf]
        %v1693 = vld [vmem:[%s300 + $0x1ac] sm:$0xf]
        %v1694 = vld [vmem:[%s300 + $0x1b0] sm:$0xf]
        %v1695 = vld [vmem:[%s300 + $0x1b4] sm:$0xf]
        %v1696 = vld [vmem:[%s300 + $0x1b8] sm:$0xf]
        %v1697 = vld [vmem:[%s300 + $0x1bc] sm:$0xf]
        %v1698 = vld [vmem:[%s300 + $0x1c0] sm:$0xf]
        %v1699 = vld [vmem:[%s300 + $0x1c4] sm:$0xf]
        %v1700 = vld [vmem:[%s300 + $0x1c8] sm:$0xf]
        %v1701 = vld [vmem:[%s300 + $0x1cc] sm:$0xf]
        %v1702 = vld [vmem:[%s300 + $0x1d0] sm:$0xf]
        %v1703 = vld [vmem:[%s300 + $0x1d4] sm:$0xf]
        %v1704 = vld [vmem:[%s300 + $0x1d8] sm:$0xf]
        %v1705 = vld [vmem:[%s300 + $0x1dc] sm:$0xf]
        %v1706 = vld [vmem:[%s300 + $0x1e0] sm:$0xf]
        %v1707 = vld [vmem:[%s300 + $0x1e4] sm:$0xf]
        %v1708 = vld [vmem:[%s300 + $0x1e8] sm:$0xf]
        %v1709 = vld [vmem:[%s300 + $0x1ec] sm:$0xf]
        %v1710 = vld [vmem:[%s300 + $0x1f0] sm:$0xf]
        %v1711 = vld [vmem:[%s300 + $0x1f4] sm:$0xf]
        %v1712 = vld [vmem:[%s300 + $0x1f8] sm:$0xf]
        %v1713 = vld [vmem:[%s300 + $0x1fc] sm:$0xf]
        %v1714 = vld [vmem:[%s300 + $0x200] sm:$0xf]
        %v1715 = vld [vmem:[%s300 + $0x204] sm:$0xf]
        %v1716 = vld [vmem:[%s300 + $0x208] sm:$0xf]
        %v1717 = vld [vmem:[%s300 + $0x20c] sm:$0xf]
        %v1718 = vld [vmem:[%s300 + $0x210] sm:$0xf]
        %v1719 = vld [vmem:[%s300 + $0x214] sm:$0xf]
        %v1720 = vld [vmem:[%s300 + $0x218] sm:$0xf]
        %v1721 = vld [vmem:[%s300 + $0x21c] sm:$0xf]
        %v1722 = vld [vmem:[%s300 + $0x220] sm:$0xf]
        %v1723 = vld [vmem:[%s300 + $0x224] sm:$0xf]
        %v1724 = vld [vmem:[%s300 + $0x228] sm:$0xf]
        %v1725 = vld [vmem:[%s300 + $0x22c] sm:$0xf]
        %v1726 = vld [vmem:[%s300 + $0x230] sm:$0xf]
        %v1727 = vld [vmem:[%s300 + $0x234] sm:$0xf]
        %v1728 = vld [vmem:[%s300 + $0x238] sm:$0xf]
        %v1729 = vld [vmem:[%s300 + $0x23c] sm:$0xf]
        %v1730 = vld [vmem:[%s300 + $0x240] sm:$0xf]
        %v1731 = vld [vmem:[%s300 + $0x244] sm:$0xf]
        %v1732 = vld [vmem:[%s300 + $0x248] sm:$0xf]
        %v1733 = vld [vmem:[%s300 + $0x24c] sm:$0xf]
        %v1734 = vld [vmem:[%s300 + $0x250] sm:$0xf]
        %v1735 = vld [vmem:[%s300 + $0x254] sm:$0xf]
        %v1736 = vld [vmem:[%s300 + $0x258] sm:$0xf]
        %v1737 = vld [vmem:[%s300 + $0x25c] sm:$0xf]
        %v1738 = vld [vmem:[%s300 + $0x260] sm:$0xf]
        %v1739 = vld [vmem:[%s300 + $0x264] sm:$0xf]
        %v1740 = vld [vmem:[%s300 + $0x268] sm:$0xf]
        %v1741 = vld [vmem:[%s300 + $0x26c] sm:$0xf]
        %v1742 = vld [vmem:[%s300 + $0x270] sm:$0xf]
        %v1743 = vld [vmem:[%s300 + $0x274] sm:$0xf]
        %v1744 = vld [vmem:[%s300 + $0x278] sm:$0xf]
        %v1745 = vld [vmem:[%s300 + $0x27c] sm:$0xf]
        %v1746 = vld [vmem:[%s300 + $0x280] sm:$0xf]
        %v1747 = vld [vmem:[%s300 + $0x284] sm:$0xf]
        %v1748 = vld [vmem:[%s300 + $0x288] sm:$0xf]
        %v1749 = vld [vmem:[%s300 + $0x28c] sm:$0xf]
        %v1750 = vld [vmem:[%s300 + $0x290] sm:$0xf]
        %v1751 = vld [vmem:[%s300 + $0x294] sm:$0xf]
        %v1752 = vld [vmem:[%s300 + $0x298] sm:$0xf]
        %v1753 = vld [vmem:[%s300 + $0x29c] sm:$0xf]
        %v1754 = vld [vmem:[%s300 + $0x2a0] sm:$0xf]
        %v1755 = vld [vmem:[%s300 + $0x2a4] sm:$0xf]
        %v1756 = vld [vmem:[%s300 + $0x2a8] sm:$0xf]
        %v1757 = vld [vmem:[%s300 + $0x2ac] sm:$0xf]
        %v1758 = vld [vmem:[%s300 + $0x2b0] sm:$0xf]
        %v1759 = vld [vmem:[%s300 + $0x2b4] sm:$0xf]
        %v1760 = vld [vmem:[%s300 + $0x2b8] sm:$0xf]
        %v1761 = vld [vmem:[%s300 + $0x2bc] sm:$0xf]
        %v1762 = vld [vmem:[%s300 + $0x2c0] sm:$0xf]
        %v1763 = vld [vmem:[%s300 + $0x2c4] sm:$0xf]
        %v1764 = vld [vmem:[%s300 + $0x2c8] sm:$0xf]
        %v1765 = vld [vmem:[%s300 + $0x2cc] sm:$0xf]
        %v1766 = vld [vmem:[%s300 + $0x2d0] sm:$0xf]
        %v1767 = vld [vmem:[%s300 + $0x2d4] sm:$0xf]
        %v1768 = vld [vmem:[%s300 + $0x2d8] sm:$0xf]
        %v1769 = vld [vmem:[%s300 + $0x2dc] sm:$0xf]
        %v1770 = vld [vmem:[%s300 + $0x2e0] sm:$0xf]
        %v1771 = vld [vmem:[%s300 + $0x2e4] sm:$0xf]
        %v1772 = vld [vmem:[%s300 + $0x2e8] sm:$0xf]
        %v1773 = vld [vmem:[%s300 + $0x2ec] sm:$0xf]
        %v1774 = vld [vmem:[%s300 + $0x2f0] sm:$0xf]
        %v1775 = vld [vmem:[%s300 + $0x2f4] sm:$0xf]
        %v1776 = vld [vmem:[%s300 + $0x2f8] sm:$0xf]
        %v1777 = vld [vmem:[%s300 + $0x2fc] sm:$0xf]
        %v1778 = vld [vmem:[%s300 + $0x300] sm:$0xf]
        %v1779 = vld [vmem:[%s300 + $0x304] sm:$0xf]
        %v1780 = vld [vmem:[%s300 + $0x308] sm:$0xf]
        %v1781 = vld [vmem:[%s300 + $0x30c] sm:$0xf]
        %v1782 = vld [vmem:[%s300 + $0x310] sm:$0xf]
        %v1783 = vld [vmem:[%s300 + $0x314] sm:$0xf]
        %v1784 = vld [vmem:[%s300 + $0x318] sm:$0xf]
        %v1785 = vld [vmem:[%s300 + $0x31c] sm:$0xf]
        %v1786 = vld [vmem:[%s300 + $0x320] sm:$0xf]
        %v1787 = vld [vmem:[%s300 + $0x324] sm:$0xf]
        %v1788 = vld [vmem:[%s300 + $0x328] sm:$0xf]
        %v1789 = vld [vmem:[%s300 + $0x32c] sm:$0xf]
        %v1790 = vld [vmem:[%s300 + $0x330] sm:$0xf]
        %v1791 = vld [vmem:[%s300 + $0x334] sm:$0xf]
        %v1792 = vld [vmem:[%s300 + $0x338] sm:$0xf]
        %v1793 = vld [vmem:[%s300 + $0x33c] sm:$0xf]
        %v1794 = vld [vmem:[%s300 + $0x340] sm:$0xf]
        %v1795 = vld [vmem:[%s300 + $0x344] sm:$0xf]
        %v1796 = vld [vmem:[%s300 + $0x348] sm:$0xf]
        %v1797 = vld [vmem:[%s300 + $0x34c] sm:$0xf]
        %v1798 = vld [vmem:[%s300 + $0x350] sm:$0xf]
        %v1799 = vld [vmem:[%s300 + $0x354] sm:$0xf]
        %v1800 = vld [vmem:[%s300 + $0x358] sm:$0xf]
        %v1801 = vld [vmem:[%s300 + $0x35c] sm:$0xf]
        %v1802 = vld [vmem:[%s300 + $0x360] sm:$0xf]
        %v1803 = vld [vmem:[%s300 + $0x364] sm:$0xf]
        %v1804 = vld [vmem:[%s300 + $0x368] sm:$0xf]
        %v1805 = vld [vmem:[%s300 + $0x36c] sm:$0xf]
        %v1806 = vld [vmem:[%s300 + $0x370] sm:$0xf]
        %v1807 = vld [vmem:[%s300 + $0x374] sm:$0xf]
        %v1808 = vld [vmem:[%s300 + $0x378] sm:$0xf]
        %v1809 = vld [vmem:[%s300 + $0x37c] sm:$0xf]
        %v1810 = vld [vmem:[%s300 + $0x380] sm:$0xf]
        %v1811 = vld [vmem:[%s300 + $0x384] sm:$0xf]
        %v1812 = vld [vmem:[%s300 + $0x388] sm:$0xf]
        %v1813 = vld [vmem:[%s300 + $0x38c] sm:$0xf]
        %v1814 = vld [vmem:[%s300 + $0x390] sm:$0xf]
        %v1815 = vld [vmem:[%s300 + $0x394] sm:$0xf]
        %v1816 = vld [vmem:[%s300 + $0x398] sm:$0xf]
        %v1817 = vld [vmem:[%s300 + $0x39c] sm:$0xf]
        %v1818 = vld [vmem:[%s300 + $0x3a0] sm:$0xf]
        %v1819 = vld [vmem:[%s300 + $0x3a4] sm:$0xf]
        %v1820 = vld [vmem:[%s300 + $0x3a8] sm:$0xf]
        %v1821 = vld [vmem:[%s300 + $0x3ac] sm:$0xf]
        %v1822 = vld [vmem:[%s300 + $0x3b0] sm:$0xf]
        %v1823 = vld [vmem:[%s300 + $0x3b4] sm:$0xf]
        %v1824 = vld [vmem:[%s300 + $0x3b8] sm:$0xf]
        %v1825 = vld [vmem:[%s300 + $0x3bc] sm:$0xf]
        %v1826 = vld [vmem:[%s300 + $0x3c0] sm:$0xf]
        %v1827 = vld [vmem:[%s300 + $0x3c4] sm:$0xf]
        %v1828 = vld [vmem:[%s300 + $0x3c8] sm:$0xf]
        %v1829 = vld [vmem:[%s300 + $0x3cc] sm:$0xf]
        %v1830 = vld [vmem:[%s300 + $0x3d0] sm:$0xf]
        %v1831 = vld [vmem:[%s300 + $0x3d4] sm:$0xf]
        %v1832 = vld [vmem:[%s300 + $0x3d8] sm:$0xf]
        %v1833 = vld [vmem:[%s300 + $0x3dc] sm:$0xf]
        %v1834 = vld [vmem:[%s300 + $0x3e0] sm:$0xf]
        %v1835 = vld [vmem:[%s300 + $0x3e4] sm:$0xf]
        %v1836 = vld [vmem:[%s300 + $0x3e8] sm:$0xf]
        %v1837 = vld [vmem:[%s300 + $0x3ec] sm:$0xf]
        %v1838 = vld [vmem:[%s300 + $0x3f0] sm:$0xf]
        %v1839 = vld [vmem:[%s300 + $0x3f4] sm:$0xf]
        %v1840 = vld [vmem:[%s300 + $0x3f8] sm:$0xf]
        %v1841 = vld [vmem:[%s300 + $0x3fc] sm:$0xf]
        %v1842 = vld [vmem:[%s350] sm:$0x1]
        %v1844 = vperm.slane %v1842, 0
        %v2102 = vunpack.c.l.b16 %v1586
        %v2103 = vunpack.c.l.b16 %v1587
        %v2104 = vunpack.c.l.b16 %v1588
        %v2105 = vunpack.c.l.b16 %v1589
        %v2106 = vunpack.c.l.b16 %v1590
        %v2107 = vunpack.c.l.b16 %v1591
        %v2108 = vunpack.c.l.b16 %v1592
        %v2109 = vunpack.c.l.b16 %v1593
        %v2110 = vunpack.c.l.b16 %v1594
        %v2111 = vunpack.c.l.b16 %v1595
        %v2112 = vunpack.c.l.b16 %v1596
        %v2113 = vunpack.c.l.b16 %v1597
        %v2114 = vunpack.c.l.b16 %v1598
        %v2115 = vunpack.c.l.b16 %v1599
        %v2116 = vunpack.c.l.b16 %v1600
        %v2117 = vunpack.c.l.b16 %v1601
        %v2118 = vunpack.c.l.b16 %v1602
        %v2119 = vunpack.c.l.b16 %v1603
        %v2120 = vunpack.c.l.b16 %v1604
        %v2121 = vunpack.c.l.b16 %v1605
        %v2122 = vunpack.c.l.b16 %v1606
        %v2123 = vunpack.c.l.b16 %v1607
        %v2124 = vunpack.c.l.b16 %v1608
        %v2125 = vunpack.c.l.b16 %v1609
        %v2126 = vunpack.c.l.b16 %v1610
        %v2127 = vunpack.c.l.b16 %v1611
        %v2128 = vunpack.c.l.b16 %v1612
        %v2129 = vunpack.c.l.b16 %v1613
        %v2130 = vunpack.c.l.b16 %v1614
        %v2131 = vunpack.c.l.b16 %v1615
        %v2132 = vunpack.c.l.b16 %v1616
        %v2133 = vunpack.c.l.b16 %v1617
        %v2134 = vunpack.c.l.b16 %v1618
        %v2135 = vunpack.c.l.b16 %v1619
        %v2136 = vunpack.c.l.b16 %v1620
        %v2137 = vunpack.c.l.b16 %v1621
        %v2138 = vunpack.c.l.b16 %v1622
        %v2139 = vunpack.c.l.b16 %v1623
        %v2140 = vunpack.c.l.b16 %v1624
        %v2141 = vunpack.c.l.b16 %v1625
        %v2142 = vunpack.c.l.b16 %v1626
        %v2143 = vunpack.c.l.b16 %v1627
        %v2144 = vunpack.c.l.b16 %v1628
        %v2145 = vunpack.c.l.b16 %v1629
        %v2146 = vunpack.c.l.b16 %v1630
        %v2147 = vunpack.c.l.b16 %v1631
        %v2148 = vunpack.c.l.b16 %v1632
        %v2149 = vunpack.c.l.b16 %v1633
        %v2150 = vunpack.c.l.b16 %v1634
        %v2151 = vunpack.c.l.b16 %v1635
        %v2152 = vunpack.c.l.b16 %v1636
        %v2153 = vunpack.c.l.b16 %v1637
        %v2154 = vunpack.c.l.b16 %v1638
        %v2155 = vunpack.c.l.b16 %v1639
        %v2156 = vunpack.c.l.b16 %v1640
        %v2157 = vunpack.c.l.b16 %v1641
        %v2158 = vunpack.c.l.b16 %v1642
        %v2159 = vunpack.c.l.b16 %v1643
        %v2160 = vunpack.c.l.b16 %v1644
        %v2161 = vunpack.c.l.b16 %v1645
        %v2162 = vunpack.c.l.b16 %v1646
        %v2163 = vunpack.c.l.b16 %v1647
        %v2164 = vunpack.c.l.b16 %v1648
        %v2165 = vunpack.c.l.b16 %v1649
        %v2166 = vunpack.c.l.b16 %v1650
        %v2167 = vunpack.c.l.b16 %v1651
        %v2168 = vunpack.c.l.b16 %v1652
        %v2169 = vunpack.c.l.b16 %v1653
        %v2170 = vunpack.c.l.b16 %v1654
        %v2171 = vunpack.c.l.b16 %v1655
        %v2172 = vunpack.c.l.b16 %v1656
        %v2173 = vunpack.c.l.b16 %v1657
        %v2174 = vunpack.c.l.b16 %v1658
        %v2175 = vunpack.c.l.b16 %v1659
        %v2176 = vunpack.c.l.b16 %v1660
        %v2177 = vunpack.c.l.b16 %v1661
        %v2178 = vunpack.c.l.b16 %v1662
        %v2179 = vunpack.c.l.b16 %v1663
        %v2180 = vunpack.c.l.b16 %v1664
        %v2181 = vunpack.c.l.b16 %v1665
        %v2182 = vunpack.c.l.b16 %v1666
        %v2183 = vunpack.c.l.b16 %v1667
        %v2184 = vunpack.c.l.b16 %v1668
        %v2185 = vunpack.c.l.b16 %v1669
        %v2186 = vunpack.c.l.b16 %v1670
        %v2187 = vunpack.c.l.b16 %v1671
        %v2188 = vunpack.c.l.b16 %v1672
        %v2189 = vunpack.c.l.b16 %v1673
        %v2190 = vunpack.c.l.b16 %v1674
        %v2191 = vunpack.c.l.b16 %v1675
        %v2192 = vunpack.c.l.b16 %v1676
        %v2193 = vunpack.c.l.b16 %v1677
        %v2194 = vunpack.c.l.b16 %v1678
        %v2195 = vunpack.c.l.b16 %v1679
        %v2196 = vunpack.c.l.b16 %v1680
        %v2197 = vunpack.c.l.b16 %v1681
        %v2198 = vunpack.c.l.b16 %v1682
        %v2199 = vunpack.c.l.b16 %v1683
        %v2200 = vunpack.c.l.b16 %v1684
        %v2201 = vunpack.c.l.b16 %v1685
        %v2202 = vunpack.c.l.b16 %v1686
        %v2203 = vunpack.c.l.b16 %v1687
        %v2204 = vunpack.c.l.b16 %v1688
        %v2205 = vunpack.c.l.b16 %v1689
        %v2206 = vunpack.c.l.b16 %v1690
        %v2207 = vunpack.c.l.b16 %v1691
        %v2208 = vunpack.c.l.b16 %v1692
        %v2209 = vunpack.c.l.b16 %v1693
        %v2210 = vunpack.c.l.b16 %v1694
        %v2211 = vunpack.c.l.b16 %v1695
        %v2212 = vunpack.c.l.b16 %v1696
        %v2213 = vunpack.c.l.b16 %v1697
        %v2214 = vunpack.c.l.b16 %v1698
        %v2215 = vunpack.c.l.b16 %v1699
        %v2216 = vunpack.c.l.b16 %v1700
        %v2217 = vunpack.c.l.b16 %v1701
        %v2218 = vunpack.c.l.b16 %v1702
        %v2219 = vunpack.c.l.b16 %v1703
        %v2220 = vunpack.c.l.b16 %v1704
        %v2221 = vunpack.c.l.b16 %v1705
        %v2222 = vunpack.c.l.b16 %v1706
        %v2223 = vunpack.c.l.b16 %v1707
        %v2224 = vunpack.c.l.b16 %v1708
        %v2225 = vunpack.c.l.b16 %v1709
        %v2226 = vunpack.c.l.b16 %v1710
        %v2227 = vunpack.c.l.b16 %v1711
        %v2228 = vunpack.c.l.b16 %v1712
        %v2229 = vunpack.c.l.b16 %v1713
        %v2230 = vunpack.c.l.b16 %v1714
        %v2231 = vunpack.c.l.b16 %v1715
        %v2232 = vunpack.c.l.b16 %v1716
        %v2233 = vunpack.c.l.b16 %v1717
        %v2234 = vunpack.c.l.b16 %v1718
        %v2235 = vunpack.c.l.b16 %v1719
        %v2236 = vunpack.c.l.b16 %v1720
        %v2237 = vunpack.c.l.b16 %v1721
        %v2238 = vunpack.c.l.b16 %v1722
        %v2239 = vunpack.c.l.b16 %v1723
        %v2240 = vunpack.c.l.b16 %v1724
        %v2241 = vunpack.c.l.b16 %v1725
        %v2242 = vunpack.c.l.b16 %v1726
        %v2243 = vunpack.c.l.b16 %v1727
        %v2244 = vunpack.c.l.b16 %v1728
        %v2245 = vunpack.c.l.b16 %v1729
        %v2246 = vunpack.c.l.b16 %v1730
        %v2247 = vunpack.c.l.b16 %v1731
        %v2248 = vunpack.c.l.b16 %v1732
        %v2249 = vunpack.c.l.b16 %v1733
        %v2250 = vunpack.c.l.b16 %v1734
        %v2251 = vunpack.c.l.b16 %v1735
        %v2252 = vunpack.c.l.b16 %v1736
        %v2253 = vunpack.c.l.b16 %v1737
        %v2254 = vunpack.c.l.b16 %v1738
        %v2255 = vunpack.c.l.b16 %v1739
        %v2256 = vunpack.c.l.b16 %v1740
        %v2257 = vunpack.c.l.b16 %v1741
        %v2258 = vunpack.c.l.b16 %v1742
        %v2259 = vunpack.c.l.b16 %v1743
        %v2260 = vunpack.c.l.b16 %v1744
        %v2261 = vunpack.c.l.b16 %v1745
        %v2262 = vunpack.c.l.b16 %v1746
        %v2263 = vunpack.c.l.b16 %v1747
        %v2264 = vunpack.c.l.b16 %v1748
        %v2265 = vunpack.c.l.b16 %v1749
        %v2266 = vunpack.c.l.b16 %v1750
        %v2267 = vunpack.c.l.b16 %v1751
        %v2268 = vunpack.c.l.b16 %v1752
        %v2269 = vunpack.c.l.b16 %v1753
        %v2270 = vunpack.c.l.b16 %v1754
        %v2271 = vunpack.c.l.b16 %v1755
        %v2272 = vunpack.c.l.b16 %v1756
        %v2273 = vunpack.c.l.b16 %v1757
        %v2274 = vunpack.c.l.b16 %v1758
        %v2275 = vunpack.c.l.b16 %v1759
        %v2276 = vunpack.c.l.b16 %v1760
        %v2277 = vunpack.c.l.b16 %v1761
        %v2278 = vunpack.c.l.b16 %v1762
        %v2279 = vunpack.c.l.b16 %v1763
        %v2280 = vunpack.c.l.b16 %v1764
        %v2281 = vunpack.c.l.b16 %v1765
        %v2282 = vunpack.c.l.b16 %v1766
        %v2283 = vunpack.c.l.b16 %v1767
        %v2284 = vunpack.c.l.b16 %v1768
        %v2285 = vunpack.c.l.b16 %v1769
        %v2286 = vunpack.c.l.b16 %v1770
        %v2287 = vunpack.c.l.b16 %v1771
        %v2288 = vunpack.c.l.b16 %v1772
        %v2289 = vunpack.c.l.b16 %v1773
        %v2290 = vunpack.c.l.b16 %v1774
        %v2291 = vunpack.c.l.b16 %v1775
        %v2292 = vunpack.c.l.b16 %v1776
        %v2293 = vunpack.c.l.b16 %v1777
        %v2294 = vunpack.c.l.b16 %v1778
        %v2295 = vunpack.c.l.b16 %v1779
        %v2296 = vunpack.c.l.b16 %v1780
        %v2297 = vunpack.c.l.b16 %v1781
        %v2298 = vunpack.c.l.b16 %v1782
        %v2299 = vunpack.c.l.b16 %v1783
        %v2300 = vunpack.c.l.b16 %v1784
        %v2301 = vunpack.c.l.b16 %v1785
        %v2302 = vunpack.c.l.b16 %v1786
        %v2303 = vunpack.c.l.b16 %v1787
        %v2304 = vunpack.c.l.b16 %v1788
        %v2305 = vunpack.c.l.b16 %v1789
        %v2306 = vunpack.c.l.b16 %v1790
        %v2307 = vunpack.c.l.b16 %v1791
        %v2308 = vunpack.c.l.b16 %v1792
        %v2309 = vunpack.c.l.b16 %v1793
        %v2310 = vunpack.c.l.b16 %v1794
        %v2311 = vunpack.c.l.b16 %v1795
        %v2312 = vunpack.c.l.b16 %v1796
        %v2313 = vunpack.c.l.b16 %v1797
        %v2314 = vunpack.c.l.b16 %v1798
        %v2315 = vunpack.c.l.b16 %v1799
        %v2316 = vunpack.c.l.b16 %v1800
        %v2317 = vunpack.c.l.b16 %v1801
        %v2318 = vunpack.c.l.b16 %v1802
        %v2319 = vunpack.c.l.b16 %v1803
        %v2320 = vunpack.c.l.b16 %v1804
        %v2321 = vunpack.c.l.b16 %v1805
        %v2322 = vunpack.c.l.b16 %v1806
        %v2323 = vunpack.c.l.b16 %v1807
        %v2324 = vunpack.c.l.b16 %v1808
        %v2325 = vunpack.c.l.b16 %v1809
        %v2326 = vunpack.c.l.b16 %v1810
        %v2327 = vunpack.c.l.b16 %v1811
        %v2328 = vunpack.c.l.b16 %v1812
        %v2329 = vunpack.c.l.b16 %v1813
        %v2330 = vunpack.c.l.b16 %v1814
        %v2331 = vunpack.c.l.b16 %v1815
        %v2332 = vunpack.c.l.b16 %v1816
        %v2333 = vunpack.c.l.b16 %v1817
        %v2334 = vunpack.c.l.b16 %v1818
        %v2335 = vunpack.c.l.b16 %v1819
        %v2336 = vunpack.c.l.b16 %v1820
        %v2337 = vunpack.c.l.b16 %v1821
        %v2338 = vunpack.c.l.b16 %v1822
        %v2339 = vunpack.c.l.b16 %v1823
        %v2340 = vunpack.c.l.b16 %v1824
        %v2341 = vunpack.c.l.b16 %v1825
        %v2342 = vunpack.c.l.b16 %v1826
        %v2343 = vunpack.c.l.b16 %v1827
        %v2344 = vunpack.c.l.b16 %v1828
        %v2345 = vunpack.c.l.b16 %v1829
        %v2346 = vunpack.c.l.b16 %v1830
        %v2347 = vunpack.c.l.b16 %v1831
        %v2348 = vunpack.c.l.b16 %v1832
        %v2349 = vunpack.c.l.b16 %v1833
        %v2350 = vunpack.c.l.b16 %v1834
        %v2351 = vunpack.c.l.b16 %v1835
        %v2352 = vunpack.c.l.b16 %v1836
        %v2353 = vunpack.c.l.b16 %v1837
        %v2354 = vunpack.c.l.b16 %v1838
        %v2355 = vunpack.c.l.b16 %v1839
        %v2356 = vunpack.c.l.b16 %v1840
        %v2357 = vunpack.c.l.b16 %v1841
        %v2358 = vpack.c.b16 %v2103, %v2102
        %v2359 = vpack.c.b16 %v2105, %v2104
        %v2360 = vpack.c.b16 %v2107, %v2106
        %v2361 = vpack.c.b16 %v2109, %v2108
        %v2362 = vpack.c.b16 %v2111, %v2110
        %v2363 = vpack.c.b16 %v2113, %v2112
        %v2364 = vpack.c.b16 %v2115, %v2114
        %v2365 = vpack.c.b16 %v2117, %v2116
        %v2366 = vpack.c.b16 %v2119, %v2118
        %v2367 = vpack.c.b16 %v2121, %v2120
        %v2368 = vpack.c.b16 %v2123, %v2122
        %v2369 = vpack.c.b16 %v2125, %v2124
        %v2370 = vpack.c.b16 %v2127, %v2126
        %v2371 = vpack.c.b16 %v2129, %v2128
        %v2372 = vpack.c.b16 %v2131, %v2130
        %v2373 = vpack.c.b16 %v2133, %v2132
        %v2374 = vpack.c.b16 %v2135, %v2134
        %v2375 = vpack.c.b16 %v2137, %v2136
        %v2376 = vpack.c.b16 %v2139, %v2138
        %v2377 = vpack.c.b16 %v2141, %v2140
        %v2378 = vpack.c.b16 %v2143, %v2142
        %v2379 = vpack.c.b16 %v2145, %v2144
        %v2380 = vpack.c.b16 %v2147, %v2146
        %v2381 = vpack.c.b16 %v2149, %v2148
        %v2382 = vpack.c.b16 %v2151, %v2150
        %v2383 = vpack.c.b16 %v2153, %v2152
        %v2384 = vpack.c.b16 %v2155, %v2154
        %v2385 = vpack.c.b16 %v2157, %v2156
        %v2386 = vpack.c.b16 %v2159, %v2158
        %v2387 = vpack.c.b16 %v2161, %v2160
        %v2388 = vpack.c.b16 %v2163, %v2162
        %v2389 = vpack.c.b16 %v2165, %v2164
        %v2390 = vpack.c.b16 %v2167, %v2166
        %v2391 = vpack.c.b16 %v2169, %v2168
        %v2392 = vpack.c.b16 %v2171, %v2170
        %v2393 = vpack.c.b16 %v2173, %v2172
        %v2394 = vpack.c.b16 %v2175, %v2174
        %v2395 = vpack.c.b16 %v2177, %v2176
        %v2396 = vpack.c.b16 %v2179, %v2178
        %v2397 = vpack.c.b16 %v2181, %v2180
        %v2398 = vpack.c.b16 %v2183, %v2182
        %v2399 = vpack.c.b16 %v2185, %v2184
        %v2400 = vpack.c.b16 %v2187, %v2186
        %v2401 = vpack.c.b16 %v2189, %v2188
        %v2402 = vpack.c.b16 %v2191, %v2190
        %v2403 = vpack.c.b16 %v2193, %v2192
        %v2404 = vpack.c.b16 %v2195, %v2194
        %v2405 = vpack.c.b16 %v2197, %v2196
        %v2406 = vpack.c.b16 %v2199, %v2198
        %v2407 = vpack.c.b16 %v2201, %v2200
        %v2408 = vpack.c.b16 %v2203, %v2202
        %v2409 = vpack.c.b16 %v2205, %v2204
        %v2410 = vpack.c.b16 %v2207, %v2206
        %v2411 = vpack.c.b16 %v2209, %v2208
        %v2412 = vpack.c.b16 %v2211, %v2210
        %v2413 = vpack.c.b16 %v2213, %v2212
        %v2414 = vpack.c.b16 %v2215, %v2214
        %v2415 = vpack.c.b16 %v2217, %v2216
        %v2416 = vpack.c.b16 %v2219, %v2218
        %v2417 = vpack.c.b16 %v2221, %v2220
        %v2418 = vpack.c.b16 %v2223, %v2222
        %v2419 = vpack.c.b16 %v2225, %v2224
        %v2420 = vpack.c.b16 %v2227, %v2226
        %v2421 = vpack.c.b16 %v2229, %v2228
        %v2422 = vpack.c.b16 %v2231, %v2230
        %v2423 = vpack.c.b16 %v2233, %v2232
        %v2424 = vpack.c.b16 %v2235, %v2234
        %v2425 = vpack.c.b16 %v2237, %v2236
        %v2426 = vpack.c.b16 %v2239, %v2238
        %v2427 = vpack.c.b16 %v2241, %v2240
        %v2428 = vpack.c.b16 %v2243, %v2242
        %v2429 = vpack.c.b16 %v2245, %v2244
        %v2430 = vpack.c.b16 %v2247, %v2246
        %v2431 = vpack.c.b16 %v2249, %v2248
        %v2432 = vpack.c.b16 %v2251, %v2250
        %v2433 = vpack.c.b16 %v2253, %v2252
        %v2434 = vpack.c.b16 %v2255, %v2254
        %v2435 = vpack.c.b16 %v2257, %v2256
        %v2436 = vpack.c.b16 %v2259, %v2258
        %v2437 = vpack.c.b16 %v2261, %v2260
        %v2438 = vpack.c.b16 %v2263, %v2262
        %v2439 = vpack.c.b16 %v2265, %v2264
        %v2440 = vpack.c.b16 %v2267, %v2266
        %v2441 = vpack.c.b16 %v2269, %v2268
        %v2442 = vpack.c.b16 %v2271, %v2270
        %v2443 = vpack.c.b16 %v2273, %v2272
        %v2444 = vpack.c.b16 %v2275, %v2274
        %v2445 = vpack.c.b16 %v2277, %v2276
        %v2446 = vpack.c.b16 %v2279, %v2278
        %v2447 = vpack.c.b16 %v2281, %v2280
        %v2448 = vpack.c.b16 %v2283, %v2282
        %v2449 = vpack.c.b16 %v2285, %v2284
        %v2450 = vpack.c.b16 %v2287, %v2286
        %v2451 = vpack.c.b16 %v2289, %v2288
        %v2452 = vpack.c.b16 %v2291, %v2290
        %v2453 = vpack.c.b16 %v2293, %v2292
        %v2454 = vpack.c.b16 %v2295, %v2294
        %v2455 = vpack.c.b16 %v2297, %v2296
        %v2456 = vpack.c.b16 %v2299, %v2298
        %v2457 = vpack.c.b16 %v2301, %v2300
        %v2458 = vpack.c.b16 %v2303, %v2302
        %v2459 = vpack.c.b16 %v2305, %v2304
        %v2460 = vpack.c.b16 %v2307, %v2306
        %v2461 = vpack.c.b16 %v2309, %v2308
        %v2462 = vpack.c.b16 %v2311, %v2310
        %v2463 = vpack.c.b16 %v2313, %v2312
        %v2464 = vpack.c.b16 %v2315, %v2314
        %v2465 = vpack.c.b16 %v2317, %v2316
        %v2466 = vpack.c.b16 %v2319, %v2318
        %v2467 = vpack.c.b16 %v2321, %v2320
        %v2468 = vpack.c.b16 %v2323, %v2322
        %v2469 = vpack.c.b16 %v2325, %v2324
        %v2470 = vpack.c.b16 %v2327, %v2326
        %v2471 = vpack.c.b16 %v2329, %v2328
        %v2472 = vpack.c.b16 %v2331, %v2330
        %v2473 = vpack.c.b16 %v2333, %v2332
        %v2474 = vpack.c.b16 %v2335, %v2334
        %v2475 = vpack.c.b16 %v2337, %v2336
        %v2476 = vpack.c.b16 %v2339, %v2338
        %v2477 = vpack.c.b16 %v2341, %v2340
        %v2478 = vpack.c.b16 %v2343, %v2342
        %v2479 = vpack.c.b16 %v2345, %v2344
        %v2480 = vpack.c.b16 %v2347, %v2346
        %v2481 = vpack.c.b16 %v2349, %v2348
        %v2482 = vpack.c.b16 %v2351, %v2350
        %v2483 = vpack.c.b16 %v2353, %v2352
        %v2484 = vpack.c.b16 %v2355, %v2354
        %v2485 = vpack.c.b16 %v2357, %v2356
        %2614 = vmatpush.bf16.msra.mxu0 %v2365
        %2615 = vmatpush.bf16.msra.mxu0 %v2364
        %2616 = vmatpush.bf16.msra.mxu0 %v2363
        %2617 = vmatpush.bf16.msra.mxu0 %v2362
        %2618 = vmatpush.bf16.msra.mxu0 %v2361
        %2619 = vmatpush.bf16.msra.mxu0 %v2360
        %2620 = vmatpush.bf16.msra.mxu0 %v2359
        %2621 = vmatpush.bf16.msra.mxu0 %v2358
        %2622 = vmatmul.bf16.gmra.mxu0 %v1570
        %v2623 = vpop.f32.mrf.mxu0
        %v2624 = vadd.f32 %v1844, %v2623
        %v2625 = vpop.f32.mrf.mxu0
        %2626 = vdwg.mxu0
        %2627 = vmatpush.bf16.msra.mxu0 %v2373
        %2628 = vmatpush.bf16.msra.mxu0 %v2372
        %2629 = vmatpush.bf16.msra.mxu0 %v2371
        %2630 = vmatpush.bf16.msra.mxu0 %v2370
        %2631 = vmatpush.bf16.msra.mxu0 %v2369
        %2632 = vmatpush.bf16.msra.mxu0 %v2368
        %2633 = vmatpush.bf16.msra.mxu0 %v2367
        %2634 = vmatpush.bf16.msra.mxu0 %v2366
        %2635 = vmatmul.bf16.gmra.mxu0 %v1571
        %v2636 = vpop.f32.mrf.mxu0
        %v2637 = vadd.f32 %v2624, %v2636
        %v2638 = vpop.f32.mrf.mxu0
        %2639 = vdwg.mxu0
        %2640 = vmatpush.bf16.msra.mxu0 %v2381
        %2641 = vmatpush.bf16.msra.mxu0 %v2380
        %2642 = vmatpush.bf16.msra.mxu0 %v2379
        %2643 = vmatpush.bf16.msra.mxu0 %v2378
        %2644 = vmatpush.bf16.msra.mxu0 %v2377
        %2645 = vmatpush.bf16.msra.mxu0 %v2376
        %2646 = vmatpush.bf16.msra.mxu0 %v2375
        %2647 = vmatpush.bf16.msra.mxu0 %v2374
        %2648 = vmatmul.bf16.gmra.mxu0 %v1572
        %v2649 = vpop.f32.mrf.mxu0
        %v2650 = vadd.f32 %v2637, %v2649
        %v2651 = vpop.f32.mrf.mxu0
        %2652 = vdwg.mxu0
        %2653 = vmatpush.bf16.msra.mxu0 %v2389
        %2654 = vmatpush.bf16.msra.mxu0 %v2388
        %2655 = vmatpush.bf16.msra.mxu0 %v2387
        %2656 = vmatpush.bf16.msra.mxu0 %v2386
        %2657 = vmatpush.bf16.msra.mxu0 %v2385
        %2658 = vmatpush.bf16.msra.mxu0 %v2384
        %2659 = vmatpush.bf16.msra.mxu0 %v2383
        %2660 = vmatpush.bf16.msra.mxu0 %v2382
        %2661 = vmatmul.bf16.gmra.mxu0 %v1573
        %v2662 = vpop.f32.mrf.mxu0
        %v2663 = vadd.f32 %v2650, %v2662
        %v2664 = vpop.f32.mrf.mxu0
        %2665 = vdwg.mxu0
        %2666 = vmatpush.bf16.msra.mxu0 %v2397
        %2667 = vmatpush.bf16.msra.mxu0 %v2396
        %2668 = vmatpush.bf16.msra.mxu0 %v2395
        %2669 = vmatpush.bf16.msra.mxu0 %v2394
        %2670 = vmatpush.bf16.msra.mxu0 %v2393
        %2671 = vmatpush.bf16.msra.mxu0 %v2392
        %2672 = vmatpush.bf16.msra.mxu0 %v2391
        %2673 = vmatpush.bf16.msra.mxu0 %v2390
        %2674 = vmatmul.bf16.gmra.mxu0 %v1574
        %v2675 = vpop.f32.mrf.mxu0
        %v2676 = vadd.f32 %v2663, %v2675
        %v2677 = vpop.f32.mrf.mxu0
        %2678 = vdwg.mxu0
        %2679 = vmatpush.bf16.msra.mxu0 %v2405
        %2680 = vmatpush.bf16.msra.mxu0 %v2404
        %2681 = vmatpush.bf16.msra.mxu0 %v2403
        %2682 = vmatpush.bf16.msra.mxu0 %v2402
        %2683 = vmatpush.bf16.msra.mxu0 %v2401
        %2684 = vmatpush.bf16.msra.mxu0 %v2400
        %2685 = vmatpush.bf16.msra.mxu0 %v2399
        %2686 = vmatpush.bf16.msra.mxu0 %v2398
        %2687 = vmatmul.bf16.gmra.mxu0 %v1575
        %v2688 = vpop.f32.mrf.mxu0
        %v2689 = vadd.f32 %v2676, %v2688
        %v2690 = vpop.f32.mrf.mxu0
        %2691 = vdwg.mxu0
        %2692 = vmatpush.bf16.msra.mxu0 %v2413
        %2693 = vmatpush.bf16.msra.mxu0 %v2412
        %2694 = vmatpush.bf16.msra.mxu0 %v2411
        %2695 = vmatpush.bf16.msra.mxu0 %v2410
        %2696 = vmatpush.bf16.msra.mxu0 %v2409
        %2697 = vmatpush.bf16.msra.mxu0 %v2408
        %2698 = vmatpush.bf16.msra.mxu0 %v2407
        %2699 = vmatpush.bf16.msra.mxu0 %v2406
        %2700 = vmatmul.bf16.gmra.mxu0 %v1576
        %v2701 = vpop.f32.mrf.mxu0
        %v2702 = vadd.f32 %v2689, %v2701
        %v2703 = vpop.f32.mrf.mxu0
        %2704 = vdwg.mxu0
        %2705 = vmatpush.bf16.msra.mxu0 %v2421
        %2706 = vmatpush.bf16.msra.mxu0 %v2420
        %2707 = vmatpush.bf16.msra.mxu0 %v2419
        %2708 = vmatpush.bf16.msra.mxu0 %v2418
        %2709 = vmatpush.bf16.msra.mxu0 %v2417
        %2710 = vmatpush.bf16.msra.mxu0 %v2416
        %2711 = vmatpush.bf16.msra.mxu0 %v2415
        %2712 = vmatpush.bf16.msra.mxu0 %v2414
        %2713 = vmatmul.bf16.gmra.mxu0 %v1577
        %v2714 = vpop.f32.mrf.mxu0
        %v2715 = vadd.f32 %v2702, %v2714
        %v2716 = vpop.f32.mrf.mxu0
        %2717 = vdwg.mxu0
        %2718 = vmatpush.bf16.msra.mxu0 %v2429
        %2719 = vmatpush.bf16.msra.mxu0 %v2428
        %2720 = vmatpush.bf16.msra.mxu0 %v2427
        %2721 = vmatpush.bf16.msra.mxu0 %v2426
        %2722 = vmatpush.bf16.msra.mxu0 %v2425
        %2723 = vmatpush.bf16.msra.mxu0 %v2424
        %2724 = vmatpush.bf16.msra.mxu0 %v2423
        %2725 = vmatpush.bf16.msra.mxu0 %v2422
        %2726 = vmatmul.bf16.gmra.mxu0 %v1578
        %v2727 = vpop.f32.mrf.mxu0
        %v2728 = vadd.f32 %v2715, %v2727
        %v2729 = vpop.f32.mrf.mxu0
        %2730 = vdwg.mxu0
        %2731 = vmatpush.bf16.msra.mxu0 %v2437
        %2732 = vmatpush.bf16.msra.mxu0 %v2436
        %2733 = vmatpush.bf16.msra.mxu0 %v2435
        %2734 = vmatpush.bf16.msra.mxu0 %v2434
        %2735 = vmatpush.bf16.msra.mxu0 %v2433
        %2736 = vmatpush.bf16.msra.mxu0 %v2432
        %2737 = vmatpush.bf16.msra.mxu0 %v2431
        %2738 = vmatpush.bf16.msra.mxu0 %v2430
        %2739 = vmatmul.bf16.gmra.mxu0 %v1579
        %v2740 = vpop.f32.mrf.mxu0
        %v2741 = vadd.f32 %v2728, %v2740
        %v2742 = vpop.f32.mrf.mxu0
        %2743 = vdwg.mxu0
        %2744 = vmatpush.bf16.msra.mxu0 %v2445
        %2745 = vmatpush.bf16.msra.mxu0 %v2444
        %2746 = vmatpush.bf16.msra.mxu0 %v2443
        %2747 = vmatpush.bf16.msra.mxu0 %v2442
        %2748 = vmatpush.bf16.msra.mxu0 %v2441
        %2749 = vmatpush.bf16.msra.mxu0 %v2440
        %2750 = vmatpush.bf16.msra.mxu0 %v2439
        %2751 = vmatpush.bf16.msra.mxu0 %v2438
        %2752 = vmatmul.bf16.gmra.mxu0 %v1580
        %v2753 = vpop.f32.mrf.mxu0
        %v2754 = vadd.f32 %v2741, %v2753
        %v2755 = vpop.f32.mrf.mxu0
        %2756 = vdwg.mxu0
        %2757 = vmatpush.bf16.msra.mxu0 %v2453
        %2758 = vmatpush.bf16.msra.mxu0 %v2452
        %2759 = vmatpush.bf16.msra.mxu0 %v2451
        %2760 = vmatpush.bf16.msra.mxu0 %v2450
        %2761 = vmatpush.bf16.msra.mxu0 %v2449
        %2762 = vmatpush.bf16.msra.mxu0 %v2448
        %2763 = vmatpush.bf16.msra.mxu0 %v2447
        %2764 = vmatpush.bf16.msra.mxu0 %v2446
        %2765 = vmatmul.bf16.gmra.mxu0 %v1581
        %v2766 = vpop.f32.mrf.mxu0
        %v2767 = vadd.f32 %v2754, %v2766
        %v2768 = vpop.f32.mrf.mxu0
        %2769 = vdwg.mxu0
        %2770 = vmatpush.bf16.msra.mxu0 %v2461
        %2771 = vmatpush.bf16.msra.mxu0 %v2460
        %2772 = vmatpush.bf16.msra.mxu0 %v2459
        %2773 = vmatpush.bf16.msra.mxu0 %v2458
        %2774 = vmatpush.bf16.msra.mxu0 %v2457
        %2775 = vmatpush.bf16.msra.mxu0 %v2456
        %2776 = vmatpush.bf16.msra.mxu0 %v2455
        %2777 = vmatpush.bf16.msra.mxu0 %v2454
        %2778 = vmatmul.bf16.gmra.mxu0 %v1582
        %v2779 = vpop.f32.mrf.mxu0
        %v2780 = vadd.f32 %v2767, %v2779
        %v2781 = vpop.f32.mrf.mxu0
        %2782 = vdwg.mxu0
        %2783 = vmatpush.bf16.msra.mxu0 %v2469
        %2784 = vmatpush.bf16.msra.mxu0 %v2468
        %2785 = vmatpush.bf16.msra.mxu0 %v2467
        %2786 = vmatpush.bf16.msra.mxu0 %v2466
        %2787 = vmatpush.bf16.msra.mxu0 %v2465
        %2788 = vmatpush.bf16.msra.mxu0 %v2464
        %2789 = vmatpush.bf16.msra.mxu0 %v2463
        %2790 = vmatpush.bf16.msra.mxu0 %v2462
        %2791 = vmatmul.bf16.gmra.mxu0 %v1583
        %v2792 = vpop.f32.mrf.mxu0
        %v2793 = vadd.f32 %v2780, %v2792
        %v2794 = vpop.f32.mrf.mxu0
        %2795 = vdwg.mxu0
        %2796 = vmatpush.bf16.msra.mxu0 %v2477
        %2797 = vmatpush.bf16.msra.mxu0 %v2476
        %2798 = vmatpush.bf16.msra.mxu0 %v2475
        %2799 = vmatpush.bf16.msra.mxu0 %v2474
        %2800 = vmatpush.bf16.msra.mxu0 %v2473
        %2801 = vmatpush.bf16.msra.mxu0 %v2472
        %2802 = vmatpush.bf16.msra.mxu0 %v2471
        %2803 = vmatpush.bf16.msra.mxu0 %v2470
        %2804 = vmatmul.bf16.gmra.mxu0 %v1584
        %v2805 = vpop.f32.mrf.mxu0
        %v2806 = vadd.f32 %v2793, %v2805
        %v2807 = vpop.f32.mrf.mxu0
        %2808 = vdwg.mxu0
        %2809 = vmatpush.bf16.msra.mxu0 %v2485
        %2810 = vmatpush.bf16.msra.mxu0 %v2484
        %2811 = vmatpush.bf16.msra.mxu0 %v2483
        %2812 = vmatpush.bf16.msra.mxu0 %v2482
        %2813 = vmatpush.bf16.msra.mxu0 %v2481
        %2814 = vmatpush.bf16.msra.mxu0 %v2480
        %2815 = vmatpush.bf16.msra.mxu0 %v2479
        %2816 = vmatpush.bf16.msra.mxu0 %v2478
        %2817 = vmatmul.bf16.gmra.mxu0 %v1585
        %v2818 = vpop.f32.mrf.mxu0
        %v2819 = vadd.f32 %v2806, %v2818
        %v2820 = vpop.f32.mrf.mxu0
        %2821 = vdwg.mxu0
        %v2822 = vtanh.pop %v2819
        %2823 = vst [vmem:[%s354] sm:$0xff] %v2822
        %p2824 = scmp.lt.s32.totalorder %s22, 1
        %s2825 = scalar_select %p2824, %s22, 1
        %s2826 = smul.addr %s2825, 8
        %s2827 = scalar_lea.vmem %s5, %s2826
        // Predicated region
        $region53: #{autoencoder_forward.1} parent=39 // pred_check
          %p2828 = pneg %p170
        $region54: #{autoencoder_forward.1} parent=39 // pred_check_branch
          %2830 = sbr.rel (%p2828) target = $region56
        $region55: #{autoencoder_forward.1} parent=39 // pred_region
          _
        $region56: #{autoencoder_forward.1} parent=39 // pred_fallthru
          _
      $region40: #{autoencoder_forward.1} parent=5 // pred_fallthru
        _
      %p2831 = scmp.le.s32.totalorder 2, %s17
      // Predicated region
      $region57: #{autoencoder_forward.1} parent=5 // pred_check
        %p2832 = pneg %p2831
      $region58: #{autoencoder_forward.1} parent=5 // pred_check_branch
        %2834 = sbr.rel (%p2832) target = $region60
      $region59: #{autoencoder_forward.1} parent=5 // pred_region
        %s2835 = ssub.s32 %s17, 2
        // Predicated region
        $region61: #{autoencoder_forward.1} parent=59 // pred_check
          %p2836 = pneg %p176
        $region62: #{autoencoder_forward.1} parent=59 // pred_check_branch
          %2838 = sbr.rel (%p2836) target = $region64
        $region63: #{autoencoder_forward.1} parent=59 // pred_region
          %p2839 = scmp.lt.s32.totalorder %s23, 1
          %s2840 = scalar_select %p2839, %s23, 1
          %s2841 = smul.addr %s2840, 8
          %s2842 = scalar_lea.vmem %s5, %s2841
        $region64: #{autoencoder_forward.1} parent=59 // pred_fallthru
          _
      $region60: #{autoencoder_forward.1} parent=5 // pred_fallthru
        _
    $region6: #{autoencoder_forward.1} parent=1 // loop_footer
      %s21 = sadd.s32 1, %s17
    $region7: #{autoencoder_forward.1} parent=1 // loop_footer_branch
      %16 = sbr.rel target = $region3
    $region8: #{autoencoder_forward.1} parent=1 // loop_exit
      _
    %2843 = vsyncpa [#allocation3], 1
    %s2844 = scalar_lea.sflag [#allocation3], 1
    %2845 = vsyncpa %s2844, 1
    %2846 = vsyncpa [#allocation5], 1
    %s2847 = scalar_lea.sflag [#allocation5], 1
    %2848 = vsyncpa %s2847, 1

</llo_original>
